<compile_context>
chip_gen: v7x
topology: tpu7x:2x2x1
jax: 0.10.0
libtpu: 0.0.40
codegen_flags: <defaults>
</compile_context>

<pallas_src>
import math

import jax
import jax.numpy as jnp
from jax.experimental import pallas as pl
from jax.experimental.pallas import tpu as pltpu

# ----------------------------- tiny DistilBERT config -----------------------
VOCAB = 100
MAX_POS = 64
HIDDEN = 32
N_HEADS = 4
HEAD_DIM = HIDDEN // N_HEADS
FFN = 64
N_LAYERS = 2
N_LABELS = 3
LN_EPS = 1e-12

# ----------------------------- packed f32 bias / LN slab layout --------------
ROW_EMB_G = 0
ROW_EMB_B = 1
ROW_CLS_B = 2
LAYER_BASE = 3
ROWS_PER_LAYER = 8
R_BQKV, R_BO, R_SA_G, R_SA_B, R_B1, R_B2, R_OUT_G, R_OUT_B = range(8)
PSLAB_ROWS = LAYER_BASE + N_LAYERS * ROWS_PER_LAYER   # 19
PSLAB_WIDTH = 128                                      # lane-dense rows


# ----------------------------- fused Pallas call ------------------------------
def fused_forward(x_emb, mask_tiled, packed, *, batch, seq):
    """One pallas_call for embeddings-LN -> 2 transformer layers -> CLS classifier."""
    M = batch * seq
    bf16 = jnp.bfloat16
    f32 = jnp.float32

    def kernel(x_ref, mask_ref, ps_ref, wqkv_ref, wo_ref, w1_ref, w2_ref,
               clsw_ref, logits_ref):
        def mxu(a_bf, w_bf):
            # operands already bf16; f32 accumulation on the MXU
            return jnp.dot(a_bf, w_bf, preferred_element_type=f32)

        def layernorm(y, g, b):
            mu = jnp.mean(y, axis=-1, keepdims=True)
            var = jnp.mean((y - mu) * (y - mu), axis=-1, keepdims=True)
            return (y - mu) * jax.lax.rsqrt(var + LN_EPS) * g + b

        def prow(r, w):
            # one packed parameter row, [1, w] f32 (broadcasts over the M rows)
            return ps_ref[r:r + 1, 0:w]

        mask = mask_ref[...]                                            # [M, NH*M]
        x = layernorm(x_ref[...], prow(ROW_EMB_G, HIDDEN), prow(ROW_EMB_B, HIDDEN))

        for l in range(N_LAYERS):
            base = LAYER_BASE + l * ROWS_PER_LAYER

            # ---------------- fused QKV projection (scale folded into Q) -------
            qkv = mxu(x.astype(bf16), wqkv_ref[l]) + prow(base + R_BQKV, 3 * HIDDEN)
            qkv_bf = qkv.astype(bf16)                                   # single cast
            q_bf = qkv_bf[:, 0 * HIDDEN:1 * HIDDEN]
            k_bf = qkv_bf[:, 1 * HIDDEN:2 * HIDDEN]
            v_bf = qkv_bf[:, 2 * HIDDEN:3 * HIDDEN]

            # ---------------- lane-packed attention scores + softmax -----------
            s_heads = []
            for h in range(N_HEADS):
                hs = slice(h * HEAD_DIM, (h + 1) * HEAD_DIM)
                s_heads.append(jax.lax.dot_general(
                    q_bf[:, hs], k_bf[:, hs], (((1,), (1,)), ((), ())),
                    preferred_element_type=f32))                        # [M, M]
            s = jnp.concatenate(s_heads, axis=-1) + mask                # [M, NH*M]
            m_ = jnp.max(s, axis=-1, keepdims=True)     # global row max: valid per-head shift
            p = jnp.exp(s - m_)                                          # one packed exp
            p_bf = p.astype(bf16)

            ctx_heads = []
            for h in range(N_HEADS):
                seg = slice(h * M, (h + 1) * M)
                inv = pl.reciprocal(jnp.sum(p[:, seg], axis=-1, keepdims=True),
                                    approx=True)
                ctx_h = mxu(p_bf[:, seg],
                            v_bf[:, h * HEAD_DIM:(h + 1) * HEAD_DIM])   # [M, Dh]
                ctx_heads.append(ctx_h * inv)
            ctx = jnp.concatenate(ctx_heads, axis=-1)                   # [M, HIDDEN]

            # fused output projection over the lane-concatenated heads
            attn_out = mxu(ctx.astype(bf16), wo_ref[l]) + prow(base + R_BO, HIDDEN)
            x = layernorm(attn_out + x,
                          prow(base + R_SA_G, HIDDEN), prow(base + R_SA_B, HIDDEN))

            # ---------------- feed-forward --------------------------------------
            h1 = mxu(x.astype(bf16), w1_ref[l]) + prow(base + R_B1, FFN)
            # TODO(synk): HF DistilBERT uses exact (erf) GELU; tanh approximation here.
            h1 = jax.nn.gelu(h1, approximate=True)
            h2 = mxu(h1.astype(bf16), w2_ref[l]) + prow(base + R_B2, HIDDEN)
            x = layernorm(h2 + x,
                          prow(base + R_OUT_G, HIDDEN), prow(base + R_OUT_B, HIDDEN))

        # -------- classifier on CLS rows only (Dropout(0.1) -> identity) --------
        x_cls = jnp.concatenate([x[b * seq:b * seq + 1, :] for b in range(batch)],
                                axis=0)                                  # [B, HIDDEN]
        logits_ref[...] = (mxu(x_cls.astype(bf16), clsw_ref[...])
                           + prow(ROW_CLS_B, N_LABELS)).astype(logits_ref.dtype)

    vmem = lambda: pl.BlockSpec(memory_space=pltpu.MemorySpace.VMEM)
    args = (x_emb, mask_tiled, packed["pslab"], packed["wqkv"], packed["wo"],
            packed["w1"], packed["w2"], packed["cls_w"])
    return pl.pallas_call(
        kernel,
        out_shape=jax.ShapeDtypeStruct((batch, N_LABELS), jnp.float32),
        in_specs=[vmem() for _ in args],
        out_specs=vmem(),
    )(*args)


# ----------------------------- params ------------------------------------------
def init_params(key):
    keys = iter(jax.random.split(key, 9))

    def nrm(shape, std=0.02):
        return std * jax.random.normal(next(keys), shape, jnp.float32)

    zeros = lambda s: jnp.zeros(s, jnp.float32)
    ones = lambda s: jnp.ones(s, jnp.float32)
    return {
        "word_emb": nrm((VOCAB, HIDDEN)),
        "pos_emb": nrm((MAX_POS, HIDDEN)),
        "emb_ln_g": ones((1, HIDDEN)), "emb_ln_b": zeros((1, HIDDEN)),
        "wq": nrm((N_LAYERS, HIDDEN, HIDDEN)), "bq": zeros((N_LAYERS, 1, HIDDEN)),
        "wk": nrm((N_LAYERS, HIDDEN, HIDDEN)), "bk": zeros((N_LAYERS, 1, HIDDEN)),
        "wv": nrm((N_LAYERS, HIDDEN, HIDDEN)), "bv": zeros((N_LAYERS, 1, HIDDEN)),
        "wo": nrm((N_LAYERS, HIDDEN, HIDDEN)), "bo": zeros((N_LAYERS, 1, HIDDEN)),
        "sa_ln_g": ones((N_LAYERS, 1, HIDDEN)), "sa_ln_b": zeros((N_LAYERS, 1, HIDDEN)),
        "w1": nrm((N_LAYERS, HIDDEN, FFN)), "b1": zeros((N_LAYERS, 1, FFN)),
        "w2": nrm((N_LAYERS, FFN, HIDDEN)), "b2": zeros((N_LAYERS, 1, HIDDEN)),
        "out_ln_g": ones((N_LAYERS, 1, HIDDEN)), "out_ln_b": zeros((N_LAYERS, 1, HIDDEN)),
        "cls_w": nrm((HIDDEN, N_LABELS)), "cls_b": zeros((1, N_LABELS)),
    }


def pack_params(p):
    """Host-side packing: fused bf16 weights + one f32 bias/LN slab."""
    scale = 1.0 / math.sqrt(HEAD_DIM)
    wqkv = jnp.concatenate([p["wq"] * scale, p["wk"], p["wv"]],
                           axis=-1).astype(jnp.bfloat16)                # [L, H, 3H]
    bqkv = jnp.concatenate([p["bq"] * scale, p["bk"], p["bv"]], axis=-1)  # [L, 1, 3H]

    slab = jnp.zeros((PSLAB_ROWS, PSLAB_WIDTH), jnp.float32)
    slab = slab.at[ROW_EMB_G, :HIDDEN].set(p["emb_ln_g"].reshape(-1))
    slab = slab.at[ROW_EMB_B, :HIDDEN].set(p["emb_ln_b"].reshape(-1))
    slab = slab.at[ROW_CLS_B, :N_LABELS].set(p["cls_b"].reshape(-1))
    for l in range(N_LAYERS):
        base = LAYER_BASE + l * ROWS_PER_LAYER
        slab = slab.at[base + R_BQKV, :3 * HIDDEN].set(bqkv[l].reshape(-1))
        slab = slab.at[base + R_BO, :HIDDEN].set(p["bo"][l].reshape(-1))
        slab = slab.at[base + R_SA_G, :HIDDEN].set(p["sa_ln_g"][l].reshape(-1))
        slab = slab.at[base + R_SA_B, :HIDDEN].set(p["sa_ln_b"][l].reshape(-1))
        slab = slab.at[base + R_B1, :FFN].set(p["b1"][l].reshape(-1))
        slab = slab.at[base + R_B2, :HIDDEN].set(p["b2"][l].reshape(-1))
        slab = slab.at[base + R_OUT_G, :HIDDEN].set(p["out_ln_g"][l].reshape(-1))
        slab = slab.at[base + R_OUT_B, :HIDDEN].set(p["out_ln_b"][l].reshape(-1))

    return {
        "word_emb": p["word_emb"], "pos_emb": p["pos_emb"],
        "pslab": slab,
        "wqkv": wqkv,
        "wo": p["wo"].astype(jnp.bfloat16),
        "w1": p["w1"].astype(jnp.bfloat16),
        "w2": p["w2"].astype(jnp.bfloat16),
        "cls_w": p["cls_w"].astype(jnp.bfloat16),
    }


# ----------------------------- model forward ------------------------------------
def model_forward(packed, input_ids, attention_mask):
    B, S = input_ids.shape
    M = B * S

    # embeddings (token-id gather is plain-JAX glue)
    x = packed["word_emb"][input_ids] + packed["pos_emb"][:S][None, :, :]
    xf = x.reshape(M, HIDDEN).astype(jnp.float32)

    # additive mask [M, M]: 0 where (same batch AND key attended), else -1e9;
    # pre-tiled across heads so the kernel's packed [M, NH*M] scores add it directly.
    batch_id = jnp.repeat(jnp.arange(B, dtype=jnp.int32), S)
    same_batch = batch_id[:, None] == batch_id[None, :]
    key_ok = (attention_mask.reshape(M) > 0)[None, :]
    mask_add = jnp.where(same_batch & key_ok, 0.0, -1e9).astype(jnp.float32)
    mask_tiled = jnp.tile(mask_add, (1, N_HEADS))                        # [M, NH*M]

    # kernel emits CLS-row logits directly: [B, N_LABELS]
    return fused_forward(xf, mask_tiled, packed, batch=B, seq=S)


# ----------------------------- main ----------------------------------------------
if __name__ == "__main__":
    key = jax.random.PRNGKey(0)
    pkey, dkey = jax.random.split(key)
    packed = pack_params(init_params(pkey))

    B, S = 2, 8
    input_ids = jax.random.randint(dkey, (B, S), 0, VOCAB, dtype=jnp.int32)
    attention_mask = jnp.array(
        [[1, 1, 1, 1, 1, 1, 1, 1],
         [1, 1, 1, 1, 1, 1, 0, 0]], dtype=jnp.int32)

    logits = jax.jit(model_forward)(packed, input_ids, attention_mask)
    jax.block_until_ready(logits)
    assert logits.shape == (B, N_LABELS), logits.shape
    assert bool(jnp.all(jnp.isfinite(logits)))
    print("KERNEL_OK")
</pallas_src>

<mosaic_0001>
module attributes {stable_mosaic.version = 11 : i64} {
  func.func @kernel(%arg0: memref<16x32xf32, #tpu.memory_space<vmem>>, %arg1: memref<16x64xf32, #tpu.memory_space<vmem>>, %arg2: memref<19x128xf32, #tpu.memory_space<vmem>>, %arg3: memref<2x32x96xbf16, #tpu.memory_space<vmem>>, %arg4: memref<2x32x32xbf16, #tpu.memory_space<vmem>>, %arg5: memref<2x32x64xbf16, #tpu.memory_space<vmem>>, %arg6: memref<2x64x32xbf16, #tpu.memory_space<vmem>>, %arg7: memref<32x3xbf16, #tpu.memory_space<vmem>>, %arg8: memref<2x3xf32, #tpu.memory_space<vmem>>) attributes {dimension_semantics = [], scalar_prefetch = 0 : i64, scratch_operands = 0 : i64, tpu.core_type = #tpu.core_type<tc>} {
    %c0 = arith.constant 0 : index
    %c0_0 = arith.constant 0 : index
    %0 = vector.load %arg1[%c0, %c0_0] : memref<16x64xf32, #tpu.memory_space<vmem>>, vector<16x64xf32>
    %c0_1 = arith.constant 0 : index
    %c0_2 = arith.constant 0 : index
    %1 = vector.load %arg0[%c0_1, %c0_2] : memref<16x32xf32, #tpu.memory_space<vmem>>, vector<16x32xf32>
    %c0_3 = arith.constant 0 : index
    %c0_4 = arith.constant 0 : index
    %2 = vector.load %arg2[%c0_3, %c0_4] : memref<19x128xf32, #tpu.memory_space<vmem>>, vector<1x32xf32>
    %c1 = arith.constant 1 : index
    %c0_5 = arith.constant 0 : index
    %3 = vector.load %arg2[%c1, %c0_5] : memref<19x128xf32, #tpu.memory_space<vmem>>, vector<1x32xf32>
    %cst = arith.constant dense<0.000000e+00> : vector<16xf32>
    %4 = vector.multi_reduction <add>, %1, %cst [1] : vector<16x32xf32> to vector<16xf32>
    %5 = vector.shape_cast %4 : vector<16xf32> to vector<16x1xf32>
    %cst_6 = arith.constant 3.200000e+01 : f32
    %6 = vector.broadcast %cst_6 : f32 to vector<16x1xf32>
    %7 = arith.divf %5, %6 : vector<16x1xf32>
    %8 = vector.broadcast %7 : vector<16x1xf32> to vector<16x32xf32>
    %9 = arith.subf %1, %8 : vector<16x32xf32>
    %10 = vector.broadcast %7 : vector<16x1xf32> to vector<16x32xf32>
    %11 = arith.subf %1, %10 : vector<16x32xf32>
    %12 = arith.mulf %9, %11 : vector<16x32xf32>
    %cst_7 = arith.constant dense<0.000000e+00> : vector<16xf32>
    %13 = vector.multi_reduction <add>, %12, %cst_7 [1] : vector<16x32xf32> to vector<16xf32>
    %14 = vector.shape_cast %13 : vector<16xf32> to vector<16x1xf32>
    %cst_8 = arith.constant 3.200000e+01 : f32
    %15 = vector.broadcast %cst_8 : f32 to vector<16x1xf32>
    %16 = arith.divf %14, %15 : vector<16x1xf32>
    %17 = vector.broadcast %7 : vector<16x1xf32> to vector<16x32xf32>
    %18 = arith.subf %1, %17 : vector<16x32xf32>
    %cst_9 = arith.constant 9.99999996E-13 : f32
    %19 = vector.broadcast %cst_9 : f32 to vector<16x1xf32>
    %20 = arith.addf %16, %19 : vector<16x1xf32>
    %21 = math.rsqrt %20 : vector<16x1xf32>
    %22 = vector.broadcast %21 : vector<16x1xf32> to vector<16x32xf32>
    %23 = arith.mulf %18, %22 : vector<16x32xf32>
    %24 = vector.broadcast %2 : vector<1x32xf32> to vector<16x32xf32>
    %25 = arith.mulf %23, %24 : vector<16x32xf32>
    %26 = vector.broadcast %3 : vector<1x32xf32> to vector<16x32xf32>
    %27 = arith.addf %25, %26 : vector<16x32xf32>
    %28 = arith.truncf %27 : vector<16x32xf32> to vector<16x32xbf16>
    %c0_10 = arith.constant 0 : index
    %c0_11 = arith.constant 0 : index
    %c0_12 = arith.constant 0 : index
    %29 = vector.load %arg3[%c0_10, %c0_11, %c0_12] : memref<2x32x96xbf16, #tpu.memory_space<vmem>>, vector<1x32x96xbf16>
    %30 = vector.shape_cast %29 : vector<1x32x96xbf16> to vector<32x96xbf16>
    %cst_13 = arith.constant dense<0.000000e+00> : vector<16x96xf32>
    %31 = tpu.matmul %28, %30, %cst_13 {dimension_numbers = #tpu.dot_dimension_numbers<[1], [0], [0], [1], [0, 0, 1, 1], [], []>} : vector<16x32xbf16>, vector<32x96xbf16>, vector<16x96xf32> -> vector<16x96xf32>
    %c3 = arith.constant 3 : index
    %c0_14 = arith.constant 0 : index
    %32 = vector.load %arg2[%c3, %c0_14] : memref<19x128xf32, #tpu.memory_space<vmem>>, vector<1x96xf32>
    %33 = vector.broadcast %32 : vector<1x96xf32> to vector<16x96xf32>
    %34 = arith.addf %31, %33 : vector<16x96xf32>
    %35 = arith.truncf %34 : vector<16x96xf32> to vector<16x96xbf16>
    %36 = vector.extract_strided_slice %35 {offsets = [0, 0], sizes = [16, 32], strides = [1, 1]} : vector<16x96xbf16> to vector<16x32xbf16>
    %37 = vector.extract_strided_slice %35 {offsets = [0, 32], sizes = [16, 32], strides = [1, 1]} : vector<16x96xbf16> to vector<16x32xbf16>
    %38 = vector.extract_strided_slice %35 {offsets = [0, 64], sizes = [16, 32], strides = [1, 1]} : vector<16x96xbf16> to vector<16x32xbf16>
    %39 = vector.extract_strided_slice %36 {offsets = [0, 0], sizes = [16, 8], strides = [1, 1]} : vector<16x32xbf16> to vector<16x8xbf16>
    %40 = vector.extract_strided_slice %37 {offsets = [0, 0], sizes = [16, 8], strides = [1, 1]} : vector<16x32xbf16> to vector<16x8xbf16>
    %cst_15 = arith.constant dense<0.000000e+00> : vector<16x16xf32>
    %41 = tpu.matmul %39, %40, %cst_15 {dimension_numbers = #tpu.dot_dimension_numbers<[1], [1], [0], [0], [0, 0, 1, 0], [], []>} : vector<16x8xbf16>, vector<16x8xbf16>, vector<16x16xf32> -> vector<16x16xf32>
    %42 = vector.extract_strided_slice %36 {offsets = [0, 8], sizes = [16, 8], strides = [1, 1]} : vector<16x32xbf16> to vector<16x8xbf16>
    %43 = vector.extract_strided_slice %37 {offsets = [0, 8], sizes = [16, 8], strides = [1, 1]} : vector<16x32xbf16> to vector<16x8xbf16>
    %cst_16 = arith.constant dense<0.000000e+00> : vector<16x16xf32>
    %44 = tpu.matmul %42, %43, %cst_16 {dimension_numbers = #tpu.dot_dimension_numbers<[1], [1], [0], [0], [0, 0, 1, 0], [], []>} : vector<16x8xbf16>, vector<16x8xbf16>, vector<16x16xf32> -> vector<16x16xf32>
    %45 = vector.extract_strided_slice %36 {offsets = [0, 16], sizes = [16, 8], strides = [1, 1]} : vector<16x32xbf16> to vector<16x8xbf16>
    %46 = vector.extract_strided_slice %37 {offsets = [0, 16], sizes = [16, 8], strides = [1, 1]} : vector<16x32xbf16> to vector<16x8xbf16>
    %cst_17 = arith.constant dense<0.000000e+00> : vector<16x16xf32>
    %47 = tpu.matmul %45, %46, %cst_17 {dimension_numbers = #tpu.dot_dimension_numbers<[1], [1], [0], [0], [0, 0, 1, 0], [], []>} : vector<16x8xbf16>, vector<16x8xbf16>, vector<16x16xf32> -> vector<16x16xf32>
    %48 = vector.extract_strided_slice %36 {offsets = [0, 24], sizes = [16, 8], strides = [1, 1]} : vector<16x32xbf16> to vector<16x8xbf16>
    %49 = vector.extract_strided_slice %37 {offsets = [0, 24], sizes = [16, 8], strides = [1, 1]} : vector<16x32xbf16> to vector<16x8xbf16>
    %cst_18 = arith.constant dense<0.000000e+00> : vector<16x16xf32>
    %50 = tpu.matmul %48, %49, %cst_18 {dimension_numbers = #tpu.dot_dimension_numbers<[1], [1], [0], [0], [0, 0, 1, 0], [], []>} : vector<16x8xbf16>, vector<16x8xbf16>, vector<16x16xf32> -> vector<16x16xf32>
    %51 = tpu.concatenate %41, %44, %47, %50 in 1 : vector<16x16xf32>, vector<16x16xf32>, vector<16x16xf32>, vector<16x16xf32> -> vector<16x64xf32>
    %52 = arith.addf %51, %0 : vector<16x64xf32>
    %cst_19 = arith.constant dense<0xFF800000> : vector<16xf32>
    %53 = vector.multi_reduction <maximumf>, %52, %cst_19 [1] : vector<16x64xf32> to vector<16xf32>
    %54 = vector.shape_cast %53 : vector<16xf32> to vector<16x1xf32>
    %55 = vector.broadcast %54 : vector<16x1xf32> to vector<16x64xf32>
    %56 = arith.subf %52, %55 : vector<16x64xf32>
    %57 = math.exp %56 : vector<16x64xf32>
    %58 = arith.truncf %57 : vector<16x64xf32> to vector<16x64xbf16>
    %59 = vector.extract_strided_slice %57 {offsets = [0, 0], sizes = [16, 16], strides = [1, 1]} : vector<16x64xf32> to vector<16x16xf32>
    %cst_20 = arith.constant dense<0.000000e+00> : vector<16xf32>
    %60 = vector.multi_reduction <add>, %59, %cst_20 [1] : vector<16x16xf32> to vector<16xf32>
    %61 = vector.shape_cast %60 : vector<16xf32> to vector<16x1xf32>
    %62 = tpu.reciprocal %61 {approx = true} : vector<16x1xf32> -> vector<16x1xf32>
    %63 = vector.extract_strided_slice %58 {offsets = [0, 0], sizes = [16, 16], strides = [1, 1]} : vector<16x64xbf16> to vector<16x16xbf16>
    %64 = vector.extract_strided_slice %38 {offsets = [0, 0], sizes = [16, 8], strides = [1, 1]} : vector<16x32xbf16> to vector<16x8xbf16>
    %cst_21 = arith.constant dense<0.000000e+00> : vector<16x8xf32>
    %65 = tpu.matmul %63, %64, %cst_21 {dimension_numbers = #tpu.dot_dimension_numbers<[1], [0], [0], [1], [0, 0, 1, 1], [], []>} : vector<16x16xbf16>, vector<16x8xbf16>, vector<16x8xf32> -> vector<16x8xf32>
    %66 = vector.broadcast %62 : vector<16x1xf32> to vector<16x8xf32>
    %67 = arith.mulf %65, %66 : vector<16x8xf32>
    %68 = vector.extract_strided_slice %57 {offsets = [0, 16], sizes = [16, 16], strides = [1, 1]} : vector<16x64xf32> to vector<16x16xf32>
    %cst_22 = arith.constant dense<0.000000e+00> : vector<16xf32>
    %69 = vector.multi_reduction <add>, %68, %cst_22 [1] : vector<16x16xf32> to vector<16xf32>
    %70 = vector.shape_cast %69 : vector<16xf32> to vector<16x1xf32>
    %71 = tpu.reciprocal %70 {approx = true} : vector<16x1xf32> -> vector<16x1xf32>
    %72 = vector.extract_strided_slice %58 {offsets = [0, 16], sizes = [16, 16], strides = [1, 1]} : vector<16x64xbf16> to vector<16x16xbf16>
    %73 = vector.extract_strided_slice %38 {offsets = [0, 8], sizes = [16, 8], strides = [1, 1]} : vector<16x32xbf16> to vector<16x8xbf16>
    %cst_23 = arith.constant dense<0.000000e+00> : vector<16x8xf32>
    %74 = tpu.matmul %72, %73, %cst_23 {dimension_numbers = #tpu.dot_dimension_numbers<[1], [0], [0], [1], [0, 0, 1, 1], [], []>} : vector<16x16xbf16>, vector<16x8xbf16>, vector<16x8xf32> -> vector<16x8xf32>
    %75 = vector.broadcast %71 : vector<16x1xf32> to vector<16x8xf32>
    %76 = arith.mulf %74, %75 : vector<16x8xf32>
    %77 = vector.extract_strided_slice %57 {offsets = [0, 32], sizes = [16, 16], strides = [1, 1]} : vector<16x64xf32> to vector<16x16xf32>
    %cst_24 = arith.constant dense<0.000000e+00> : vector<16xf32>
    %78 = vector.multi_reduction <add>, %77, %cst_24 [1] : vector<16x16xf32> to vector<16xf32>
    %79 = vector.shape_cast %78 : vector<16xf32> to vector<16x1xf32>
    %80 = tpu.reciprocal %79 {approx = true} : vector<16x1xf32> -> vector<16x1xf32>
    %81 = vector.extract_strided_slice %58 {offsets = [0, 32], sizes = [16, 16], strides = [1, 1]} : vector<16x64xbf16> to vector<16x16xbf16>
    %82 = vector.extract_strided_slice %38 {offsets = [0, 16], sizes = [16, 8], strides = [1, 1]} : vector<16x32xbf16> to vector<16x8xbf16>
    %cst_25 = arith.constant dense<0.000000e+00> : vector<16x8xf32>
    %83 = tpu.matmul %81, %82, %cst_25 {dimension_numbers = #tpu.dot_dimension_numbers<[1], [0], [0], [1], [0, 0, 1, 1], [], []>} : vector<16x16xbf16>, vector<16x8xbf16>, vector<16x8xf32> -> vector<16x8xf32>
    %84 = vector.broadcast %80 : vector<16x1xf32> to vector<16x8xf32>
    %85 = arith.mulf %83, %84 : vector<16x8xf32>
    %86 = vector.extract_strided_slice %57 {offsets = [0, 48], sizes = [16, 16], strides = [1, 1]} : vector<16x64xf32> to vector<16x16xf32>
    %cst_26 = arith.constant dense<0.000000e+00> : vector<16xf32>
    %87 = vector.multi_reduction <add>, %86, %cst_26 [1] : vector<16x16xf32> to vector<16xf32>
    %88 = vector.shape_cast %87 : vector<16xf32> to vector<16x1xf32>
    %89 = tpu.reciprocal %88 {approx = true} : vector<16x1xf32> -> vector<16x1xf32>
    %90 = vector.extract_strided_slice %58 {offsets = [0, 48], sizes = [16, 16], strides = [1, 1]} : vector<16x64xbf16> to vector<16x16xbf16>
    %91 = vector.extract_strided_slice %38 {offsets = [0, 24], sizes = [16, 8], strides = [1, 1]} : vector<16x32xbf16> to vector<16x8xbf16>
    %cst_27 = arith.constant dense<0.000000e+00> : vector<16x8xf32>
    %92 = tpu.matmul %90, %91, %cst_27 {dimension_numbers = #tpu.dot_dimension_numbers<[1], [0], [0], [1], [0, 0, 1, 1], [], []>} : vector<16x16xbf16>, vector<16x8xbf16>, vector<16x8xf32> -> vector<16x8xf32>
    %93 = vector.broadcast %89 : vector<16x1xf32> to vector<16x8xf32>
    %94 = arith.mulf %92, %93 : vector<16x8xf32>
    %95 = tpu.concatenate %67, %76, %85, %94 in 1 : vector<16x8xf32>, vector<16x8xf32>, vector<16x8xf32>, vector<16x8xf32> -> vector<16x32xf32>
    %96 = arith.truncf %95 : vector<16x32xf32> to vector<16x32xbf16>
    %c0_28 = arith.constant 0 : index
    %c0_29 = arith.constant 0 : index
    %c0_30 = arith.constant 0 : index
    %97 = vector.load %arg4[%c0_28, %c0_29, %c0_30] : memref<2x32x32xbf16, #tpu.memory_space<vmem>>, vector<1x32x32xbf16>
    %98 = vector.shape_cast %97 : vector<1x32x32xbf16> to vector<32x32xbf16>
    %cst_31 = arith.constant dense<0.000000e+00> : vector<16x32xf32>
    %99 = tpu.matmul %96, %98, %cst_31 {dimension_numbers = #tpu.dot_dimension_numbers<[1], [0], [0], [1], [0, 0, 1, 1], [], []>} : vector<16x32xbf16>, vector<32x32xbf16>, vector<16x32xf32> -> vector<16x32xf32>
    %c4 = arith.constant 4 : index
    %c0_32 = arith.constant 0 : index
    %100 = vector.load %arg2[%c4, %c0_32] : memref<19x128xf32, #tpu.memory_space<vmem>>, vector<1x32xf32>
    %101 = vector.broadcast %100 : vector<1x32xf32> to vector<16x32xf32>
    %102 = arith.addf %99, %101 : vector<16x32xf32>
    %103 = arith.addf %102, %27 : vector<16x32xf32>
    %c5 = arith.constant 5 : index
    %c0_33 = arith.constant 0 : index
    %104 = vector.load %arg2[%c5, %c0_33] : memref<19x128xf32, #tpu.memory_space<vmem>>, vector<1x32xf32>
    %c6 = arith.constant 6 : index
    %c0_34 = arith.constant 0 : index
    %105 = vector.load %arg2[%c6, %c0_34] : memref<19x128xf32, #tpu.memory_space<vmem>>, vector<1x32xf32>
    %cst_35 = arith.constant dense<0.000000e+00> : vector<16xf32>
    %106 = vector.multi_reduction <add>, %103, %cst_35 [1] : vector<16x32xf32> to vector<16xf32>
    %107 = vector.shape_cast %106 : vector<16xf32> to vector<16x1xf32>
    %cst_36 = arith.constant 3.200000e+01 : f32
    %108 = vector.broadcast %cst_36 : f32 to vector<16x1xf32>
    %109 = arith.divf %107, %108 : vector<16x1xf32>
    %110 = vector.broadcast %109 : vector<16x1xf32> to vector<16x32xf32>
    %111 = arith.subf %103, %110 : vector<16x32xf32>
    %112 = vector.broadcast %109 : vector<16x1xf32> to vector<16x32xf32>
    %113 = arith.subf %103, %112 : vector<16x32xf32>
    %114 = arith.mulf %111, %113 : vector<16x32xf32>
    %cst_37 = arith.constant dense<0.000000e+00> : vector<16xf32>
    %115 = vector.multi_reduction <add>, %114, %cst_37 [1] : vector<16x32xf32> to vector<16xf32>
    %116 = vector.shape_cast %115 : vector<16xf32> to vector<16x1xf32>
    %cst_38 = arith.constant 3.200000e+01 : f32
    %117 = vector.broadcast %cst_38 : f32 to vector<16x1xf32>
    %118 = arith.divf %116, %117 : vector<16x1xf32>
    %119 = vector.broadcast %109 : vector<16x1xf32> to vector<16x32xf32>
    %120 = arith.subf %103, %119 : vector<16x32xf32>
    %cst_39 = arith.constant 9.99999996E-13 : f32
    %121 = vector.broadcast %cst_39 : f32 to vector<16x1xf32>
    %122 = arith.addf %118, %121 : vector<16x1xf32>
    %123 = math.rsqrt %122 : vector<16x1xf32>
    %124 = vector.broadcast %123 : vector<16x1xf32> to vector<16x32xf32>
    %125 = arith.mulf %120, %124 : vector<16x32xf32>
    %126 = vector.broadcast %104 : vector<1x32xf32> to vector<16x32xf32>
    %127 = arith.mulf %125, %126 : vector<16x32xf32>
    %128 = vector.broadcast %105 : vector<1x32xf32> to vector<16x32xf32>
    %129 = arith.addf %127, %128 : vector<16x32xf32>
    %130 = arith.truncf %129 : vector<16x32xf32> to vector<16x32xbf16>
    %c0_40 = arith.constant 0 : index
    %c0_41 = arith.constant 0 : index
    %c0_42 = arith.constant 0 : index
    %131 = vector.load %arg5[%c0_40, %c0_41, %c0_42] : memref<2x32x64xbf16, #tpu.memory_space<vmem>>, vector<1x32x64xbf16>
    %132 = vector.shape_cast %131 : vector<1x32x64xbf16> to vector<32x64xbf16>
    %cst_43 = arith.constant dense<0.000000e+00> : vector<16x64xf32>
    %133 = tpu.matmul %130, %132, %cst_43 {dimension_numbers = #tpu.dot_dimension_numbers<[1], [0], [0], [1], [0, 0, 1, 1], [], []>} : vector<16x32xbf16>, vector<32x64xbf16>, vector<16x64xf32> -> vector<16x64xf32>
    %c7 = arith.constant 7 : index
    %c0_44 = arith.constant 0 : index
    %134 = vector.load %arg2[%c7, %c0_44] : memref<19x128xf32, #tpu.memory_space<vmem>>, vector<1x64xf32>
    %135 = vector.broadcast %134 : vector<1x64xf32> to vector<16x64xf32>
    %136 = arith.addf %133, %135 : vector<16x64xf32>
    %137 = arith.mulf %136, %136 : vector<16x64xf32>
    %138 = arith.mulf %136, %137 : vector<16x64xf32>
    %cst_45 = arith.constant 4.471500e-02 : f32
    %139 = vector.broadcast %cst_45 : f32 to vector<16x64xf32>
    %140 = arith.mulf %139, %138 : vector<16x64xf32>
    %141 = arith.addf %136, %140 : vector<16x64xf32>
    %cst_46 = arith.constant 0.797884583 : f32
    %142 = vector.broadcast %cst_46 : f32 to vector<16x64xf32>
    %143 = arith.mulf %142, %141 : vector<16x64xf32>
    %144 = math.tanh %143 : vector<16x64xf32>
    %cst_47 = arith.constant 1.000000e+00 : f32
    %145 = vector.broadcast %cst_47 : f32 to vector<16x64xf32>
    %146 = arith.addf %145, %144 : vector<16x64xf32>
    %cst_48 = arith.constant 5.000000e-01 : f32
    %147 = vector.broadcast %cst_48 : f32 to vector<16x64xf32>
    %148 = arith.mulf %147, %146 : vector<16x64xf32>
    %149 = arith.mulf %136, %148 : vector<16x64xf32>
    %150 = arith.truncf %149 : vector<16x64xf32> to vector<16x64xbf16>
    %c0_49 = arith.constant 0 : index
    %c0_50 = arith.constant 0 : index
    %c0_51 = arith.constant 0 : index
    %151 = vector.load %arg6[%c0_49, %c0_50, %c0_51] : memref<2x64x32xbf16, #tpu.memory_space<vmem>>, vector<1x64x32xbf16>
    %152 = vector.shape_cast %151 : vector<1x64x32xbf16> to vector<64x32xbf16>
    %cst_52 = arith.constant dense<0.000000e+00> : vector<16x32xf32>
    %153 = tpu.matmul %150, %152, %cst_52 {dimension_numbers = #tpu.dot_dimension_numbers<[1], [0], [0], [1], [0, 0, 1, 1], [], []>} : vector<16x64xbf16>, vector<64x32xbf16>, vector<16x32xf32> -> vector<16x32xf32>
    %c8 = arith.constant 8 : index
    %c0_53 = arith.constant 0 : index
    %154 = vector.load %arg2[%c8, %c0_53] : memref<19x128xf32, #tpu.memory_space<vmem>>, vector<1x32xf32>
    %155 = vector.broadcast %154 : vector<1x32xf32> to vector<16x32xf32>
    %156 = arith.addf %153, %155 : vector<16x32xf32>
    %157 = arith.addf %156, %129 : vector<16x32xf32>
    %c9 = arith.constant 9 : index
    %c0_54 = arith.constant 0 : index
    %158 = vector.load %arg2[%c9, %c0_54] : memref<19x128xf32, #tpu.memory_space<vmem>>, vector<1x32xf32>
    %c10 = arith.constant 10 : index
    %c0_55 = arith.constant 0 : index
    %159 = vector.load %arg2[%c10, %c0_55] : memref<19x128xf32, #tpu.memory_space<vmem>>, vector<1x32xf32>
    %cst_56 = arith.constant dense<0.000000e+00> : vector<16xf32>
    %160 = vector.multi_reduction <add>, %157, %cst_56 [1] : vector<16x32xf32> to vector<16xf32>
    %161 = vector.shape_cast %160 : vector<16xf32> to vector<16x1xf32>
    %cst_57 = arith.constant 3.200000e+01 : f32
    %162 = vector.broadcast %cst_57 : f32 to vector<16x1xf32>
    %163 = arith.divf %161, %162 : vector<16x1xf32>
    %164 = vector.broadcast %163 : vector<16x1xf32> to vector<16x32xf32>
    %165 = arith.subf %157, %164 : vector<16x32xf32>
    %166 = vector.broadcast %163 : vector<16x1xf32> to vector<16x32xf32>
    %167 = arith.subf %157, %166 : vector<16x32xf32>
    %168 = arith.mulf %165, %167 : vector<16x32xf32>
    %cst_58 = arith.constant dense<0.000000e+00> : vector<16xf32>
    %169 = vector.multi_reduction <add>, %168, %cst_58 [1] : vector<16x32xf32> to vector<16xf32>
    %170 = vector.shape_cast %169 : vector<16xf32> to vector<16x1xf32>
    %cst_59 = arith.constant 3.200000e+01 : f32
    %171 = vector.broadcast %cst_59 : f32 to vector<16x1xf32>
    %172 = arith.divf %170, %171 : vector<16x1xf32>
    %173 = vector.broadcast %163 : vector<16x1xf32> to vector<16x32xf32>
    %174 = arith.subf %157, %173 : vector<16x32xf32>
    %cst_60 = arith.constant 9.99999996E-13 : f32
    %175 = vector.broadcast %cst_60 : f32 to vector<16x1xf32>
    %176 = arith.addf %172, %175 : vector<16x1xf32>
    %177 = math.rsqrt %176 : vector<16x1xf32>
    %178 = vector.broadcast %177 : vector<16x1xf32> to vector<16x32xf32>
    %179 = arith.mulf %174, %178 : vector<16x32xf32>
    %180 = vector.broadcast %158 : vector<1x32xf32> to vector<16x32xf32>
    %181 = arith.mulf %179, %180 : vector<16x32xf32>
    %182 = vector.broadcast %159 : vector<1x32xf32> to vector<16x32xf32>
    %183 = arith.addf %181, %182 : vector<16x32xf32>
    %184 = arith.truncf %183 : vector<16x32xf32> to vector<16x32xbf16>
    %c1_61 = arith.constant 1 : index
    %c0_62 = arith.constant 0 : index
    %c0_63 = arith.constant 0 : index
    %185 = vector.load %arg3[%c1_61, %c0_62, %c0_63] : memref<2x32x96xbf16, #tpu.memory_space<vmem>>, vector<1x32x96xbf16>
    %186 = vector.shape_cast %185 : vector<1x32x96xbf16> to vector<32x96xbf16>
    %cst_64 = arith.constant dense<0.000000e+00> : vector<16x96xf32>
    %187 = tpu.matmul %184, %186, %cst_64 {dimension_numbers = #tpu.dot_dimension_numbers<[1], [0], [0], [1], [0, 0, 1, 1], [], []>} : vector<16x32xbf16>, vector<32x96xbf16>, vector<16x96xf32> -> vector<16x96xf32>
    %c11 = arith.constant 11 : index
    %c0_65 = arith.constant 0 : index
    %188 = vector.load %arg2[%c11, %c0_65] : memref<19x128xf32, #tpu.memory_space<vmem>>, vector<1x96xf32>
    %189 = vector.broadcast %188 : vector<1x96xf32> to vector<16x96xf32>
    %190 = arith.addf %187, %189 : vector<16x96xf32>
    %191 = arith.truncf %190 : vector<16x96xf32> to vector<16x96xbf16>
    %192 = vector.extract_strided_slice %191 {offsets = [0, 0], sizes = [16, 32], strides = [1, 1]} : vector<16x96xbf16> to vector<16x32xbf16>
    %193 = vector.extract_strided_slice %191 {offsets = [0, 32], sizes = [16, 32], strides = [1, 1]} : vector<16x96xbf16> to vector<16x32xbf16>
    %194 = vector.extract_strided_slice %191 {offsets = [0, 64], sizes = [16, 32], strides = [1, 1]} : vector<16x96xbf16> to vector<16x32xbf16>
    %195 = vector.extract_strided_slice %192 {offsets = [0, 0], sizes = [16, 8], strides = [1, 1]} : vector<16x32xbf16> to vector<16x8xbf16>
    %196 = vector.extract_strided_slice %193 {offsets = [0, 0], sizes = [16, 8], strides = [1, 1]} : vector<16x32xbf16> to vector<16x8xbf16>
    %cst_66 = arith.constant dense<0.000000e+00> : vector<16x16xf32>
    %197 = tpu.matmul %195, %196, %cst_66 {dimension_numbers = #tpu.dot_dimension_numbers<[1], [1], [0], [0], [0, 0, 1, 0], [], []>} : vector<16x8xbf16>, vector<16x8xbf16>, vector<16x16xf32> -> vector<16x16xf32>
    %198 = vector.extract_strided_slice %192 {offsets = [0, 8], sizes = [16, 8], strides = [1, 1]} : vector<16x32xbf16> to vector<16x8xbf16>
    %199 = vector.extract_strided_slice %193 {offsets = [0, 8], sizes = [16, 8], strides = [1, 1]} : vector<16x32xbf16> to vector<16x8xbf16>
    %cst_67 = arith.constant dense<0.000000e+00> : vector<16x16xf32>
    %200 = tpu.matmul %198, %199, %cst_67 {dimension_numbers = #tpu.dot_dimension_numbers<[1], [1], [0], [0], [0, 0, 1, 0], [], []>} : vector<16x8xbf16>, vector<16x8xbf16>, vector<16x16xf32> -> vector<16x16xf32>
    %201 = vector.extract_strided_slice %192 {offsets = [0, 16], sizes = [16, 8], strides = [1, 1]} : vector<16x32xbf16> to vector<16x8xbf16>
    %202 = vector.extract_strided_slice %193 {offsets = [0, 16], sizes = [16, 8], strides = [1, 1]} : vector<16x32xbf16> to vector<16x8xbf16>
    %cst_68 = arith.constant dense<0.000000e+00> : vector<16x16xf32>
    %203 = tpu.matmul %201, %202, %cst_68 {dimension_numbers = #tpu.dot_dimension_numbers<[1], [1], [0], [0], [0, 0, 1, 0], [], []>} : vector<16x8xbf16>, vector<16x8xbf16>, vector<16x16xf32> -> vector<16x16xf32>
    %204 = vector.extract_strided_slice %192 {offsets = [0, 24], sizes = [16, 8], strides = [1, 1]} : vector<16x32xbf16> to vector<16x8xbf16>
    %205 = vector.extract_strided_slice %193 {offsets = [0, 24], sizes = [16, 8], strides = [1, 1]} : vector<16x32xbf16> to vector<16x8xbf16>
    %cst_69 = arith.constant dense<0.000000e+00> : vector<16x16xf32>
    %206 = tpu.matmul %204, %205, %cst_69 {dimension_numbers = #tpu.dot_dimension_numbers<[1], [1], [0], [0], [0, 0, 1, 0], [], []>} : vector<16x8xbf16>, vector<16x8xbf16>, vector<16x16xf32> -> vector<16x16xf32>
    %207 = tpu.concatenate %197, %200, %203, %206 in 1 : vector<16x16xf32>, vector<16x16xf32>, vector<16x16xf32>, vector<16x16xf32> -> vector<16x64xf32>
    %208 = arith.addf %207, %0 : vector<16x64xf32>
    %cst_70 = arith.constant dense<0xFF800000> : vector<16xf32>
    %209 = vector.multi_reduction <maximumf>, %208, %cst_70 [1] : vector<16x64xf32> to vector<16xf32>
    %210 = vector.shape_cast %209 : vector<16xf32> to vector<16x1xf32>
    %211 = vector.broadcast %210 : vector<16x1xf32> to vector<16x64xf32>
    %212 = arith.subf %208, %211 : vector<16x64xf32>
    %213 = math.exp %212 : vector<16x64xf32>
    %214 = arith.truncf %213 : vector<16x64xf32> to vector<16x64xbf16>
    %215 = vector.extract_strided_slice %213 {offsets = [0, 0], sizes = [16, 16], strides = [1, 1]} : vector<16x64xf32> to vector<16x16xf32>
    %cst_71 = arith.constant dense<0.000000e+00> : vector<16xf32>
    %216 = vector.multi_reduction <add>, %215, %cst_71 [1] : vector<16x16xf32> to vector<16xf32>
    %217 = vector.shape_cast %216 : vector<16xf32> to vector<16x1xf32>
    %218 = tpu.reciprocal %217 {approx = true} : vector<16x1xf32> -> vector<16x1xf32>
    %219 = vector.extract_strided_slice %214 {offsets = [0, 0], sizes = [16, 16], strides = [1, 1]} : vector<16x64xbf16> to vector<16x16xbf16>
    %220 = vector.extract_strided_slice %194 {offsets = [0, 0], sizes = [16, 8], strides = [1, 1]} : vector<16x32xbf16> to vector<16x8xbf16>
    %cst_72 = arith.constant dense<0.000000e+00> : vector<16x8xf32>
    %221 = tpu.matmul %219, %220, %cst_72 {dimension_numbers = #tpu.dot_dimension_numbers<[1], [0], [0], [1], [0, 0, 1, 1], [], []>} : vector<16x16xbf16>, vector<16x8xbf16>, vector<16x8xf32> -> vector<16x8xf32>
    %222 = vector.broadcast %218 : vector<16x1xf32> to vector<16x8xf32>
    %223 = arith.mulf %221, %222 : vector<16x8xf32>
    %224 = vector.extract_strided_slice %213 {offsets = [0, 16], sizes = [16, 16], strides = [1, 1]} : vector<16x64xf32> to vector<16x16xf32>
    %cst_73 = arith.constant dense<0.000000e+00> : vector<16xf32>
    %225 = vector.multi_reduction <add>, %224, %cst_73 [1] : vector<16x16xf32> to vector<16xf32>
    %226 = vector.shape_cast %225 : vector<16xf32> to vector<16x1xf32>
    %227 = tpu.reciprocal %226 {approx = true} : vector<16x1xf32> -> vector<16x1xf32>
    %228 = vector.extract_strided_slice %214 {offsets = [0, 16], sizes = [16, 16], strides = [1, 1]} : vector<16x64xbf16> to vector<16x16xbf16>
    %229 = vector.extract_strided_slice %194 {offsets = [0, 8], sizes = [16, 8], strides = [1, 1]} : vector<16x32xbf16> to vector<16x8xbf16>
    %cst_74 = arith.constant dense<0.000000e+00> : vector<16x8xf32>
    %230 = tpu.matmul %228, %229, %cst_74 {dimension_numbers = #tpu.dot_dimension_numbers<[1], [0], [0], [1], [0, 0, 1, 1], [], []>} : vector<16x16xbf16>, vector<16x8xbf16>, vector<16x8xf32> -> vector<16x8xf32>
    %231 = vector.broadcast %227 : vector<16x1xf32> to vector<16x8xf32>
    %232 = arith.mulf %230, %231 : vector<16x8xf32>
    %233 = vector.extract_strided_slice %213 {offsets = [0, 32], sizes = [16, 16], strides = [1, 1]} : vector<16x64xf32> to vector<16x16xf32>
    %cst_75 = arith.constant dense<0.000000e+00> : vector<16xf32>
    %234 = vector.multi_reduction <add>, %233, %cst_75 [1] : vector<16x16xf32> to vector<16xf32>
    %235 = vector.shape_cast %234 : vector<16xf32> to vector<16x1xf32>
    %236 = tpu.reciprocal %235 {approx = true} : vector<16x1xf32> -> vector<16x1xf32>
    %237 = vector.extract_strided_slice %214 {offsets = [0, 32], sizes = [16, 16], strides = [1, 1]} : vector<16x64xbf16> to vector<16x16xbf16>
    %238 = vector.extract_strided_slice %194 {offsets = [0, 16], sizes = [16, 8], strides = [1, 1]} : vector<16x32xbf16> to vector<16x8xbf16>
    %cst_76 = arith.constant dense<0.000000e+00> : vector<16x8xf32>
    %239 = tpu.matmul %237, %238, %cst_76 {dimension_numbers = #tpu.dot_dimension_numbers<[1], [0], [0], [1], [0, 0, 1, 1], [], []>} : vector<16x16xbf16>, vector<16x8xbf16>, vector<16x8xf32> -> vector<16x8xf32>
    %240 = vector.broadcast %236 : vector<16x1xf32> to vector<16x8xf32>
    %241 = arith.mulf %239, %240 : vector<16x8xf32>
    %242 = vector.extract_strided_slice %213 {offsets = [0, 48], sizes = [16, 16], strides = [1, 1]} : vector<16x64xf32> to vector<16x16xf32>
    %cst_77 = arith.constant dense<0.000000e+00> : vector<16xf32>
    %243 = vector.multi_reduction <add>, %242, %cst_77 [1] : vector<16x16xf32> to vector<16xf32>
    %244 = vector.shape_cast %243 : vector<16xf32> to vector<16x1xf32>
    %245 = tpu.reciprocal %244 {approx = true} : vector<16x1xf32> -> vector<16x1xf32>
    %246 = vector.extract_strided_slice %214 {offsets = [0, 48], sizes = [16, 16], strides = [1, 1]} : vector<16x64xbf16> to vector<16x16xbf16>
    %247 = vector.extract_strided_slice %194 {offsets = [0, 24], sizes = [16, 8], strides = [1, 1]} : vector<16x32xbf16> to vector<16x8xbf16>
    %cst_78 = arith.constant dense<0.000000e+00> : vector<16x8xf32>
    %248 = tpu.matmul %246, %247, %cst_78 {dimension_numbers = #tpu.dot_dimension_numbers<[1], [0], [0], [1], [0, 0, 1, 1], [], []>} : vector<16x16xbf16>, vector<16x8xbf16>, vector<16x8xf32> -> vector<16x8xf32>
    %249 = vector.broadcast %245 : vector<16x1xf32> to vector<16x8xf32>
    %250 = arith.mulf %248, %249 : vector<16x8xf32>
    %251 = tpu.concatenate %223, %232, %241, %250 in 1 : vector<16x8xf32>, vector<16x8xf32>, vector<16x8xf32>, vector<16x8xf32> -> vector<16x32xf32>
    %252 = arith.truncf %251 : vector<16x32xf32> to vector<16x32xbf16>
    %c1_79 = arith.constant 1 : index
    %c0_80 = arith.constant 0 : index
    %c0_81 = arith.constant 0 : index
    %253 = vector.load %arg4[%c1_79, %c0_80, %c0_81] : memref<2x32x32xbf16, #tpu.memory_space<vmem>>, vector<1x32x32xbf16>
    %254 = vector.shape_cast %253 : vector<1x32x32xbf16> to vector<32x32xbf16>
    %cst_82 = arith.constant dense<0.000000e+00> : vector<16x32xf32>
    %255 = tpu.matmul %252, %254, %cst_82 {dimension_numbers = #tpu.dot_dimension_numbers<[1], [0], [0], [1], [0, 0, 1, 1], [], []>} : vector<16x32xbf16>, vector<32x32xbf16>, vector<16x32xf32> -> vector<16x32xf32>
    %c12 = arith.constant 12 : index
    %c0_83 = arith.constant 0 : index
    %256 = vector.load %arg2[%c12, %c0_83] : memref<19x128xf32, #tpu.memory_space<vmem>>, vector<1x32xf32>
    %257 = vector.broadcast %256 : vector<1x32xf32> to vector<16x32xf32>
    %258 = arith.addf %255, %257 : vector<16x32xf32>
    %259 = arith.addf %258, %183 : vector<16x32xf32>
    %c13 = arith.constant 13 : index
    %c0_84 = arith.constant 0 : index
    %260 = vector.load %arg2[%c13, %c0_84] : memref<19x128xf32, #tpu.memory_space<vmem>>, vector<1x32xf32>
    %c14 = arith.constant 14 : index
    %c0_85 = arith.constant 0 : index
    %261 = vector.load %arg2[%c14, %c0_85] : memref<19x128xf32, #tpu.memory_space<vmem>>, vector<1x32xf32>
    %cst_86 = arith.constant dense<0.000000e+00> : vector<16xf32>
    %262 = vector.multi_reduction <add>, %259, %cst_86 [1] : vector<16x32xf32> to vector<16xf32>
    %263 = vector.shape_cast %262 : vector<16xf32> to vector<16x1xf32>
    %cst_87 = arith.constant 3.200000e+01 : f32
    %264 = vector.broadcast %cst_87 : f32 to vector<16x1xf32>
    %265 = arith.divf %263, %264 : vector<16x1xf32>
    %266 = vector.broadcast %265 : vector<16x1xf32> to vector<16x32xf32>
    %267 = arith.subf %259, %266 : vector<16x32xf32>
    %268 = vector.broadcast %265 : vector<16x1xf32> to vector<16x32xf32>
    %269 = arith.subf %259, %268 : vector<16x32xf32>
    %270 = arith.mulf %267, %269 : vector<16x32xf32>
    %cst_88 = arith.constant dense<0.000000e+00> : vector<16xf32>
    %271 = vector.multi_reduction <add>, %270, %cst_88 [1] : vector<16x32xf32> to vector<16xf32>
    %272 = vector.shape_cast %271 : vector<16xf32> to vector<16x1xf32>
    %cst_89 = arith.constant 3.200000e+01 : f32
    %273 = vector.broadcast %cst_89 : f32 to vector<16x1xf32>
    %274 = arith.divf %272, %273 : vector<16x1xf32>
    %275 = vector.broadcast %265 : vector<16x1xf32> to vector<16x32xf32>
    %276 = arith.subf %259, %275 : vector<16x32xf32>
    %cst_90 = arith.constant 9.99999996E-13 : f32
    %277 = vector.broadcast %cst_90 : f32 to vector<16x1xf32>
    %278 = arith.addf %274, %277 : vector<16x1xf32>
    %279 = math.rsqrt %278 : vector<16x1xf32>
    %280 = vector.broadcast %279 : vector<16x1xf32> to vector<16x32xf32>
    %281 = arith.mulf %276, %280 : vector<16x32xf32>
    %282 = vector.broadcast %260 : vector<1x32xf32> to vector<16x32xf32>
    %283 = arith.mulf %281, %282 : vector<16x32xf32>
    %284 = vector.broadcast %261 : vector<1x32xf32> to vector<16x32xf32>
    %285 = arith.addf %283, %284 : vector<16x32xf32>
    %286 = arith.truncf %285 : vector<16x32xf32> to vector<16x32xbf16>
    %c1_91 = arith.constant 1 : index
    %c0_92 = arith.constant 0 : index
    %c0_93 = arith.constant 0 : index
    %287 = vector.load %arg5[%c1_91, %c0_92, %c0_93] : memref<2x32x64xbf16, #tpu.memory_space<vmem>>, vector<1x32x64xbf16>
    %288 = vector.shape_cast %287 : vector<1x32x64xbf16> to vector<32x64xbf16>
    %cst_94 = arith.constant dense<0.000000e+00> : vector<16x64xf32>
    %289 = tpu.matmul %286, %288, %cst_94 {dimension_numbers = #tpu.dot_dimension_numbers<[1], [0], [0], [1], [0, 0, 1, 1], [], []>} : vector<16x32xbf16>, vector<32x64xbf16>, vector<16x64xf32> -> vector<16x64xf32>
    %c15 = arith.constant 15 : index
    %c0_95 = arith.constant 0 : index
    %290 = vector.load %arg2[%c15, %c0_95] : memref<19x128xf32, #tpu.memory_space<vmem>>, vector<1x64xf32>
    %291 = vector.broadcast %290 : vector<1x64xf32> to vector<16x64xf32>
    %292 = arith.addf %289, %291 : vector<16x64xf32>
    %293 = arith.mulf %292, %292 : vector<16x64xf32>
    %294 = arith.mulf %292, %293 : vector<16x64xf32>
    %cst_96 = arith.constant 4.471500e-02 : f32
    %295 = vector.broadcast %cst_96 : f32 to vector<16x64xf32>
    %296 = arith.mulf %295, %294 : vector<16x64xf32>
    %297 = arith.addf %292, %296 : vector<16x64xf32>
    %cst_97 = arith.constant 0.797884583 : f32
    %298 = vector.broadcast %cst_97 : f32 to vector<16x64xf32>
    %299 = arith.mulf %298, %297 : vector<16x64xf32>
    %300 = math.tanh %299 : vector<16x64xf32>
    %cst_98 = arith.constant 1.000000e+00 : f32
    %301 = vector.broadcast %cst_98 : f32 to vector<16x64xf32>
    %302 = arith.addf %301, %300 : vector<16x64xf32>
    %cst_99 = arith.constant 5.000000e-01 : f32
    %303 = vector.broadcast %cst_99 : f32 to vector<16x64xf32>
    %304 = arith.mulf %303, %302 : vector<16x64xf32>
    %305 = arith.mulf %292, %304 : vector<16x64xf32>
    %306 = arith.truncf %305 : vector<16x64xf32> to vector<16x64xbf16>
    %c1_100 = arith.constant 1 : index
    %c0_101 = arith.constant 0 : index
    %c0_102 = arith.constant 0 : index
    %307 = vector.load %arg6[%c1_100, %c0_101, %c0_102] : memref<2x64x32xbf16, #tpu.memory_space<vmem>>, vector<1x64x32xbf16>
    %308 = vector.shape_cast %307 : vector<1x64x32xbf16> to vector<64x32xbf16>
    %cst_103 = arith.constant dense<0.000000e+00> : vector<16x32xf32>
    %309 = tpu.matmul %306, %308, %cst_103 {dimension_numbers = #tpu.dot_dimension_numbers<[1], [0], [0], [1], [0, 0, 1, 1], [], []>} : vector<16x64xbf16>, vector<64x32xbf16>, vector<16x32xf32> -> vector<16x32xf32>
    %c16 = arith.constant 16 : index
    %c0_104 = arith.constant 0 : index
    %310 = vector.load %arg2[%c16, %c0_104] : memref<19x128xf32, #tpu.memory_space<vmem>>, vector<1x32xf32>
    %311 = vector.broadcast %310 : vector<1x32xf32> to vector<16x32xf32>
    %312 = arith.addf %309, %311 : vector<16x32xf32>
    %313 = arith.addf %312, %285 : vector<16x32xf32>
    %c17 = arith.constant 17 : index
    %c0_105 = arith.constant 0 : index
    %314 = vector.load %arg2[%c17, %c0_105] : memref<19x128xf32, #tpu.memory_space<vmem>>, vector<1x32xf32>
    %c18 = arith.constant 18 : index
    %c0_106 = arith.constant 0 : index
    %315 = vector.load %arg2[%c18, %c0_106] : memref<19x128xf32, #tpu.memory_space<vmem>>, vector<1x32xf32>
    %cst_107 = arith.constant dense<0.000000e+00> : vector<16xf32>
    %316 = vector.multi_reduction <add>, %313, %cst_107 [1] : vector<16x32xf32> to vector<16xf32>
    %317 = vector.shape_cast %316 : vector<16xf32> to vector<16x1xf32>
    %cst_108 = arith.constant 3.200000e+01 : f32
    %318 = vector.broadcast %cst_108 : f32 to vector<16x1xf32>
    %319 = arith.divf %317, %318 : vector<16x1xf32>
    %320 = vector.broadcast %319 : vector<16x1xf32> to vector<16x32xf32>
    %321 = arith.subf %313, %320 : vector<16x32xf32>
    %322 = vector.broadcast %319 : vector<16x1xf32> to vector<16x32xf32>
    %323 = arith.subf %313, %322 : vector<16x32xf32>
    %324 = arith.mulf %321, %323 : vector<16x32xf32>
    %cst_109 = arith.constant dense<0.000000e+00> : vector<16xf32>
    %325 = vector.multi_reduction <add>, %324, %cst_109 [1] : vector<16x32xf32> to vector<16xf32>
    %326 = vector.shape_cast %325 : vector<16xf32> to vector<16x1xf32>
    %cst_110 = arith.constant 3.200000e+01 : f32
    %327 = vector.broadcast %cst_110 : f32 to vector<16x1xf32>
    %328 = arith.divf %326, %327 : vector<16x1xf32>
    %329 = vector.broadcast %319 : vector<16x1xf32> to vector<16x32xf32>
    %330 = arith.subf %313, %329 : vector<16x32xf32>
    %cst_111 = arith.constant 9.99999996E-13 : f32
    %331 = vector.broadcast %cst_111 : f32 to vector<16x1xf32>
    %332 = arith.addf %328, %331 : vector<16x1xf32>
    %333 = math.rsqrt %332 : vector<16x1xf32>
    %334 = vector.broadcast %333 : vector<16x1xf32> to vector<16x32xf32>
    %335 = arith.mulf %330, %334 : vector<16x32xf32>
    %336 = vector.broadcast %314 : vector<1x32xf32> to vector<16x32xf32>
    %337 = arith.mulf %335, %336 : vector<16x32xf32>
    %338 = vector.broadcast %315 : vector<1x32xf32> to vector<16x32xf32>
    %339 = arith.addf %337, %338 : vector<16x32xf32>
    %340 = vector.extract_strided_slice %339 {offsets = [0, 0], sizes = [1, 32], strides = [1, 1]} : vector<16x32xf32> to vector<1x32xf32>
    %341 = vector.extract_strided_slice %339 {offsets = [8, 0], sizes = [1, 32], strides = [1, 1]} : vector<16x32xf32> to vector<1x32xf32>
    %342 = tpu.concatenate %340, %341 in 0 : vector<1x32xf32>, vector<1x32xf32> -> vector<2x32xf32>
    %343 = arith.truncf %342 : vector<2x32xf32> to vector<2x32xbf16>
    %c0_112 = arith.constant 0 : index
    %c0_113 = arith.constant 0 : index
    %344 = vector.load %arg7[%c0_112, %c0_113] : memref<32x3xbf16, #tpu.memory_space<vmem>>, vector<32x3xbf16>
    %cst_114 = arith.constant dense<0.000000e+00> : vector<2x3xf32>
    %345 = tpu.matmul %343, %344, %cst_114 {dimension_numbers = #tpu.dot_dimension_numbers<[1], [0], [0], [1], [0, 0, 1, 1], [], []>} : vector<2x32xbf16>, vector<32x3xbf16>, vector<2x3xf32> -> vector<2x3xf32>
    %c2 = arith.constant 2 : index
    %c0_115 = arith.constant 0 : index
    %346 = vector.load %arg2[%c2, %c0_115] : memref<19x128xf32, #tpu.memory_space<vmem>>, vector<1x3xf32>
    %347 = vector.broadcast %346 : vector<1x3xf32> to vector<2x3xf32>
    %348 = arith.addf %345, %347 : vector<2x3xf32>
    %c0_116 = arith.constant 0 : index
    %c0_117 = arith.constant 0 : index
    %349 = vector.load %arg8[%c0_116, %c0_117] : memref<2x3xf32, #tpu.memory_space<vmem>>, vector<2x3xf32>
    tpu.vector_store %arg8[%c0_116, %c0_117], %348 {strides = array<i32>} : memref<2x3xf32, #tpu.memory_space<vmem>>, vector<2x3xf32>,
    return
  }
}

</mosaic_0001>

<llo_original>
// kernel: tile.9
$region0: #{tile.9}
  %s0 = inlined_call_operand.vmem [shape: f32[16,4,16], index: 0, kind: input, shape index: {}]
  %s1 = inlined_call_operand.vmem [shape: f32[16,64], index: 1, kind: output, shape index: {}]
  $region1: #{tile.9} parent=0
    #allocation0 [shape = 'u8[65536]{0}', space=vmem, size = 0x10000, scoped, tag = 'scoped mem for input reshape']
    %s3 = sshllo.u32 0, 4
    %s4 = smul.addr 4, 15
    %s5 = scalar_lea.vmem %s0, %s4
    %v6 = vld [vmem:[%s5] sm:%s3]
    %s7 = scalar_lea.vmem [#allocation0], 120
    %8 = vst [vmem:[%s7] sm:%s3] %v6
    %s9 = smul.addr 4, 14
    %s10 = scalar_lea.vmem %s0, %s9
    %v11 = vld [vmem:[%s10] sm:%s3]
    %s12 = scalar_lea.vmem [#allocation0], 112
    %13 = vst [vmem:[%s12] sm:%s3] %v11
    %s14 = smul.addr 4, 13
    %s15 = scalar_lea.vmem %s0, %s14
    %v16 = vld [vmem:[%s15] sm:%s3]
    %s17 = scalar_lea.vmem [#allocation0], 104
    %18 = vst [vmem:[%s17] sm:%s3] %v16
    %s19 = smul.addr 4, 12
    %s20 = scalar_lea.vmem %s0, %s19
    %v21 = vld [vmem:[%s20] sm:%s3]
    %s22 = scalar_lea.vmem [#allocation0], 96
    %23 = vst [vmem:[%s22] sm:%s3] %v21
    %s24 = smul.addr 4, 11
    %s25 = scalar_lea.vmem %s0, %s24
    %v26 = vld [vmem:[%s25] sm:%s3]
    %s27 = scalar_lea.vmem [#allocation0], 88
    %28 = vst [vmem:[%s27] sm:%s3] %v26
    %s29 = smul.addr 4, 10
    %s30 = scalar_lea.vmem %s0, %s29
    %v31 = vld [vmem:[%s30] sm:%s3]
    %s32 = scalar_lea.vmem [#allocation0], 80
    %33 = vst [vmem:[%s32] sm:%s3] %v31
    %s34 = smul.addr 4, 9
    %s35 = scalar_lea.vmem %s0, %s34
    %v36 = vld [vmem:[%s35] sm:%s3]
    %s37 = scalar_lea.vmem [#allocation0], 72
    %38 = vst [vmem:[%s37] sm:%s3] %v36
    %s39 = smul.addr 4, 8
    %s40 = scalar_lea.vmem %s0, %s39
    %v41 = vld [vmem:[%s40] sm:%s3]
    %s42 = scalar_lea.vmem [#allocation0], 64
    %43 = vst [vmem:[%s42] sm:%s3] %v41
    %s44 = smul.addr 4, 7
    %s45 = scalar_lea.vmem %s0, %s44
    %v46 = vld [vmem:[%s45] sm:%s3]
    %s47 = scalar_lea.vmem [#allocation0], 56
    %48 = vst [vmem:[%s47] sm:%s3] %v46
    %s49 = smul.addr 4, 6
    %s50 = scalar_lea.vmem %s0, %s49
    %v51 = vld [vmem:[%s50] sm:%s3]
    %s52 = scalar_lea.vmem [#allocation0], 48
    %53 = vst [vmem:[%s52] sm:%s3] %v51
    %s54 = smul.addr 4, 5
    %s55 = scalar_lea.vmem %s0, %s54
    %v56 = vld [vmem:[%s55] sm:%s3]
    %s57 = scalar_lea.vmem [#allocation0], 40
    %58 = vst [vmem:[%s57] sm:%s3] %v56
    %s59 = smul.addr 4, 4
    %s60 = scalar_lea.vmem %s0, %s59
    %v61 = vld [vmem:[%s60] sm:%s3]
    %s62 = scalar_lea.vmem [#allocation0], 32
    %63 = vst [vmem:[%s62] sm:%s3] %v61
    %s64 = smul.addr 4, 3
    %s65 = scalar_lea.vmem %s0, %s64
    %v66 = vld [vmem:[%s65] sm:%s3]
    %s67 = scalar_lea.vmem [#allocation0], 24
    %68 = vst [vmem:[%s67] sm:%s3] %v66
    %s69 = smul.addr 4, 2
    %s70 = scalar_lea.vmem %s0, %s69
    %v71 = vld [vmem:[%s70] sm:%s3]
    %s72 = scalar_lea.vmem [#allocation0], 16
    %73 = vst [vmem:[%s72] sm:%s3] %v71
    %s74 = scalar_lea.vmem %s0, 4
    %v75 = vld [vmem:[%s74] sm:%s3]
    %s76 = scalar_lea.vmem [#allocation0], 8
    %77 = vst [vmem:[%s76] sm:%s3] %v75
    %v78 = vld [vmem:[%s0] sm:%s3]
    %79 = vst [vmem:[#allocation0] sm:%s3] %v78
    %v80 = vld [vmem:[#allocation0] ss:$8 sm:$0xf]
    %v81 = vld [vmem:[#allocation0] ss:$8 sm:$0xf0]
    %vm82 = vcmask 1047556
    %v83 = vsel %vm82, %v81, %v80
    %vm84 = vcmask 130048
    %85 = vst.msk [vmem:[%s1] sm:$0xff] %vm84, %v83
    %s86 = scalar_lea.vmem [#allocation0], 64
    %v87 = vld [vmem:[%s86] ss:$8 sm:$0xf]
    %s88 = scalar_lea.vmem [#allocation0], 64
    %v89 = vld [vmem:[%s88] ss:$8 sm:$0xf0]
    %vm90 = vcmask 1047556
    %v91 = vsel %vm90, %v89, %v87
    %vm92 = vcmask 130048
    %s93 = scalar_lea.vmem %s1, 8
    %94 = vst.msk [vmem:[%s93] sm:$0xff] %vm92, %v91
    %s95 = scalar_lea.vmem [#allocation0], 3
    %v96 = vld [vmem:[%s95] ss:$8 sm:$0xf]
    %s97 = scalar_lea.vmem [#allocation0], 3
    %v98 = vld [vmem:[%s97] ss:$8 sm:$0xf0]
    %vm99 = vcmask 1047556
    %v100 = vsel %vm99, %v98, %v96
    %101 = vrot.lane.b32.xlu0 %v100, 48
    %v102 = vpop.permute.xlu0 %101
    %vm103 = vcmask 523648
    %104 = vst.msk [vmem:[%s1] sm:$0xff] %vm103, %v102
    %s105 = scalar_lea.vmem [#allocation0], 67
    %v106 = vld [vmem:[%s105] ss:$8 sm:$0xf]
    %s107 = scalar_lea.vmem [#allocation0], 67
    %v108 = vld [vmem:[%s107] ss:$8 sm:$0xf0]
    %vm109 = vcmask 1047556
    %v110 = vsel %vm109, %v108, %v106
    %111 = vrot.lane.b32.xlu0 %v110, 48
    %v112 = vpop.permute.xlu0 %111
    %vm113 = vcmask 523648
    %s114 = scalar_lea.vmem %s1, 8
    %115 = vst.msk [vmem:[%s114] sm:$0xff] %vm113, %v112
    %s116 = scalar_lea.vmem [#allocation0], 2
    %v117 = vld [vmem:[%s116] ss:$8 sm:$0xf]
    %s118 = scalar_lea.vmem [#allocation0], 2
    %v119 = vld [vmem:[%s118] ss:$8 sm:$0xf0]
    %vm120 = vcmask 1047556
    %v121 = vsel %vm120, %v119, %v117
    %122 = vrot.lane.b32.xlu0 %v121, 32
    %v123 = vpop.permute.xlu0 %122
    %vm124 = vcmask 392448
    %125 = vst.msk [vmem:[%s1] sm:$0xff] %vm124, %v123
    %s126 = scalar_lea.vmem [#allocation0], 66
    %v127 = vld [vmem:[%s126] ss:$8 sm:$0xf]
    %s128 = scalar_lea.vmem [#allocation0], 66
    %v129 = vld [vmem:[%s128] ss:$8 sm:$0xf0]
    %vm130 = vcmask 1047556
    %v131 = vsel %vm130, %v129, %v127
    %132 = vrot.lane.b32.xlu0 %v131, 32
    %v133 = vpop.permute.xlu0 %132
    %vm134 = vcmask 392448
    %s135 = scalar_lea.vmem %s1, 8
    %136 = vst.msk [vmem:[%s135] sm:$0xff] %vm134, %v133
    %s137 = scalar_lea.vmem [#allocation0], 1
    %v138 = vld [vmem:[%s137] ss:$8 sm:$0xf]
    %s139 = scalar_lea.vmem [#allocation0], 1
    %v140 = vld [vmem:[%s139] ss:$8 sm:$0xf0]
    %vm141 = vcmask 1047556
    %v142 = vsel %vm141, %v140, %v138
    %143 = vrot.lane.b32.xlu0 %v142, 16
    %v144 = vpop.permute.xlu0 %143
    %vm145 = vcmask 261248
    %146 = vst.msk [vmem:[%s1] sm:$0xff] %vm145, %v144
    %s147 = scalar_lea.vmem [#allocation0], 65
    %v148 = vld [vmem:[%s147] ss:$8 sm:$0xf]
    %s149 = scalar_lea.vmem [#allocation0], 65
    %v150 = vld [vmem:[%s149] ss:$8 sm:$0xf0]
    %vm151 = vcmask 1047556
    %v152 = vsel %vm151, %v150, %v148
    %153 = vrot.lane.b32.xlu0 %v152, 16
    %v154 = vpop.permute.xlu0 %153
    %vm155 = vcmask 261248
    %s156 = scalar_lea.vmem %s1, 8
    %157 = vst.msk [vmem:[%s156] sm:$0xff] %vm155, %v154

// kernel: model_forward.1
$region0: #{model_forward.1}
  #allocation0 [shape = 'u32[]', space=smem, size = 0x4, offset = 0x4, fixed_abs, tag = 'smem constant byte address 0x4 - core index']
  #allocation1 [shape = 'u32[144,128]{1,0:T(1,128)}', space=vmem, size = 0x12000, scoped, tag = 'internal scratch']
  %s0 = inlined_call_operand.vmem [shape: f32[16,32], index: 0, kind: input, shape index: {}]
  %s1 = inlined_call_operand.vmem [shape: f32[16,64], index: 1, kind: input, shape index: {}]
  %s2 = inlined_call_operand.vmem [shape: f32[19,128], index: 2, kind: input, shape index: {}]
  %s3 = inlined_call_operand.vmem [shape: bf16[2,32,96], index: 3, kind: input, shape index: {}]
  %s4 = inlined_call_operand.vmem [shape: bf16[2,32,32], index: 4, kind: input, shape index: {}]
  %s5 = inlined_call_operand.vmem [shape: bf16[2,32,64], index: 5, kind: input, shape index: {}]
  %s6 = inlined_call_operand.vmem [shape: bf16[2,64,32], index: 6, kind: input, shape index: {}]
  %s7 = inlined_call_operand.vmem [shape: bf16[32,3], index: 7, kind: input, shape index: {}]
  %s8 = inlined_call_operand.hbm [shape: f32[2,3], index: 8, kind: output, shape index: {}]
  %s9 = sld [smem:[#allocation0]]
  $region42: #{model_forward.1} parent=0
    _
  %s11 = ssub.s32 1, %s9
  %s12 = scalar_select 0, %s11, %s9
  $region1: #{model_forward.1} parent=0
    #allocation2 [shape = 'u8[1024]{0}', space=vmem, size = 0x400, scoped, tag = 'output window, operand 0, single buffered']
    #allocation3 [shape = 's32[1]{0}', space=sflag, size = 0x4, scoped, tag = 'scoped memory for model_forward.1']
    %13 = vsyncpa [#allocation3], 0
    // Predicated region
    $region2: #{model_forward.1} parent=1 // pred_check
      _
    $region3: #{model_forward.1} parent=1 // pred_check_branch
      %15 = sbr.rel (0) target = $region5
    $region4: #{model_forward.1} parent=1 // pred_region
      _
    $region5: #{model_forward.1} parent=1 // pred_fallthru
      _
    // Predicated region
    $region6: #{model_forward.1} parent=1 // pred_check
      _
    $region7: #{model_forward.1} parent=1 // pred_check_branch
      %17 = sbr.rel (0) target = $region9
    $region8: #{model_forward.1} parent=1 // pred_region
      _
    $region9: #{model_forward.1} parent=1 // pred_fallthru
      _
    // Predicated region
    $region10: #{model_forward.1} parent=1 // pred_check
      _
    $region11: #{model_forward.1} parent=1 // pred_check_branch
      %19 = sbr.rel (0) target = $region13
    $region12: #{model_forward.1} parent=1 // pred_region
      _
    $region13: #{model_forward.1} parent=1 // pred_fallthru
      _
    // Predicated region
    $region14: #{model_forward.1} parent=1 // pred_check
      _
    $region15: #{model_forward.1} parent=1 // pred_check_branch
      %21 = sbr.rel (0) target = $region17
    $region16: #{model_forward.1} parent=1 // pred_region
      _
    $region17: #{model_forward.1} parent=1 // pred_fallthru
      _
    // Predicated region
    $region18: #{model_forward.1} parent=1 // pred_check
      _
    $region19: #{model_forward.1} parent=1 // pred_check_branch
      %23 = sbr.rel (0) target = $region21
    $region20: #{model_forward.1} parent=1 // pred_region
      _
    $region21: #{model_forward.1} parent=1 // pred_fallthru
      _
    // Predicated region
    $region22: #{model_forward.1} parent=1 // pred_check
      _
    $region23: #{model_forward.1} parent=1 // pred_check_branch
      %25 = sbr.rel (0) target = $region25
    $region24: #{model_forward.1} parent=1 // pred_region
      _
    $region25: #{model_forward.1} parent=1 // pred_fallthru
      _
    // Predicated region
    $region26: #{model_forward.1} parent=1 // pred_check
      _
    $region27: #{model_forward.1} parent=1 // pred_check_branch
      %27 = sbr.rel (0) target = $region29
    $region28: #{model_forward.1} parent=1 // pred_region
      _
    $region29: #{model_forward.1} parent=1 // pred_fallthru
      _
    // Predicated region
    $region30: #{model_forward.1} parent=1 // pred_check
      _
    $region31: #{model_forward.1} parent=1 // pred_check_branch
      %29 = sbr.rel (0) target = $region33
    $region32: #{model_forward.1} parent=1 // pred_region
      _
    $region33: #{model_forward.1} parent=1 // pred_fallthru
      _
    %v31 = vld [vmem:[%s1] sm:$0xff]
    %v32 = vld [vmem:[%s1 + $0x8] sm:$0xff]
    %v33 = vld [vmem:[%s0] sm:$0xff]
    %v34 = vld [vmem:[%s0 + $0x8] sm:$0xff]
    %v35 = vld [vmem:[%s2] sm:$0x1]
    %v36 = vld [vmem:[%s2 + $0x1] sm:$0x1]
    %vm37 = vcmask 261120
    %v38 = vsel %vm37, %v33, 0.0
    %39 = vadd.xlane.f32.xlu0 %v38
    %v40 = vpop.xlane.xlu0 %39
    %v41 = vsel %vm37, %v34, 0.0
    %42 = vadd.xlane.f32.xlu0 %v41
    %v43 = vpop.xlane.xlu0 %42
    %v44 = vrcp.pop 32.0
    %v45 = vmul.f32 %v40, %v44
    %v46 = vmul.f32 %v43, %v44
    %v47 = vsub.f32 %v33, %v45
    %v48 = vsub.f32 %v34, %v46
    %v49 = vmul.f32 %v47, %v47
    %v50 = vmul.f32 %v48, %v48
    %v51 = vsel %vm37, %v49, 0.0
    %52 = vadd.xlane.f32.xlu0 %v51
    %v53 = vpop.xlane.xlu0 %52
    %v54 = vsel %vm37, %v50, 0.0
    %55 = vadd.xlane.f32.xlu0 %v54
    %v56 = vpop.xlane.xlu0 %55
    %v57 = vmul.f32 %v53, %v44
    %v58 = vmul.f32 %v56, %v44
    %v59 = vadd.f32 %v57, 1e-12
    %v60 = vadd.f32 %v58, 1e-12
    %v61 = vrsqrt.pop %v59
    %v62 = vrsqrt.pop %v60
    %v63 = vmul.f32 %v47, %v61
    %v64 = vmul.f32 %v48, %v62
    %v65 = vlaneseq
    %v66 = vshrl.u32 %v65, 7
    %v67 = vsub.s32 0, %v66
    %v68 = vrot.slane %v35, %v67
    %v69 = vmul.f32 %v63, %v68
    %v70 = vmul.f32 %v64, %v68
    %v71 = vlaneseq
    %v72 = vshrl.u32 %v71, 7
    %v73 = vsub.s32 0, %v72
    %v74 = vrot.slane %v36, %v73
    %v75 = vadd.f32 %v69, %v74
    %v76 = vadd.f32 %v70, %v74
    %v77 = vpack.c.bf16 %v76, %v75
    %v78 = vld [vmem:[%s3] sm:$0xf]
    %v79 = vld [vmem:[%s3 + $0x4] sm:$0xf]
    %v80 = vld [vmem:[%s3 + $0x8] sm:$0xf]
    %v81 = vld [vmem:[%s3 + $0xc] sm:$0xf]
    %v82 = vld [vmem:[%s2 + $0x3] sm:$0x1]
    %v83 = vlaneseq
    %v84 = vshrl.u32 %v83, 7
    %v85 = vsub.s32 0, %v84
    %v86 = vrot.slane %v82, %v85
    %v91 = vunpack.c.l.b16 %v78
    %v92 = vunpack.c.l.b16 %v79
    %v93 = vunpack.c.l.b16 %v80
    %v94 = vunpack.c.l.b16 %v81
    %v95 = vpack.c.b16 %v92, %v91
    %v96 = vpack.c.b16 %v94, %v93
    %v100 = vsel %vm37, %v77, 0
    %102 = vmatprep.subr.bf16.mxu0 0
    %103 = vmatpush1.bf16.msra.mxu0 %v95
    %104 = vmatprep.subr.bf16.mxu0 0
    %105 = vmatpush1.bf16.msra.mxu0 %v96
    %106 = vmatprep.subr.bf16.mxu0 0
    %107 = vmatpush1.bf16.msra.mxu0 0
    %108 = vmatprep.subr.bf16.mxu0 0
    %109 = vmatpush1.bf16.msra.mxu0 0
    %110 = vmatprep.subr.bf16.mxu0 0
    %111 = vmatpush1.bf16.msra.mxu0 0
    %112 = vmatprep.subr.bf16.mxu0 0
    %113 = vmatpush1.bf16.msra.mxu0 0
    %114 = vmatprep.subr.bf16.mxu0 0
    %115 = vmatpush1.bf16.msra.mxu0 0
    %116 = vmatprep.subr.bf16.mxu0 0
    %117 = vmatpush1.bf16.msra.mxu0 0
    %118 = vmatprep.subr.bf16.mxu0 0
    %119 = vmatpush1.bf16.msra.mxu0 0
    %120 = vmatprep.subr.bf16.mxu0 0
    %121 = vmatpush1.bf16.msra.mxu0 0
    %122 = vmatprep.subr.bf16.mxu0 0
    %123 = vmatpush1.bf16.msra.mxu0 0
    %124 = vmatprep.subr.bf16.mxu0 0
    %125 = vmatpush1.bf16.msra.mxu0 0
    %126 = vmatprep.subr.bf16.mxu0 0
    %127 = vmatpush1.bf16.msra.mxu0 0
    %128 = vmatprep.subr.bf16.mxu0 0
    %129 = vmatpush1.bf16.msra.mxu0 0
    %130 = vmatprep.subr.bf16.mxu0 0
    %131 = vmatpush1.bf16.msra.mxu0 0
    %132 = vmatprep.subr.bf16.mxu0 0
    %133 = vmatpush1.bf16.msra.mxu0 0
    %134 = vmatprep.mubr.bf16.mxu0 0
    %135 = vmatmul.mubr.bf16.gmra.mrb[0].mxu0 %v100
    %v136 = vpop.f32.mrb[0].mxu0
    %v137 = vadd.f32 %v86, %v136
    %v138 = vpop.f32.mrb[0].mxu0
    %v139 = vpop.f32.mrb[0].mxu0
    %v140 = vadd.f32 %v86, %v139
    %v141 = vpop.f32.mrb[0].mxu0
    %142 = vdwg.mxu0
    %v143 = vpack.c.bf16 %v140, %v137
    %145 = vrot.lane.b32.xlu0 %v143, 96
    %v146 = vpop.permute.xlu0 %145
    %vm147 = vcmask 64512
    %v149 = vsel %vm147, %v143, 0
    %v152 = vsel %vm147, %v146, 0
    %154 = vmatprep.subr.bf16.mxu0 0
    %155 = vmatpush1.bf16.xpose.msra.mxu0 %v152
    %156 = vmatprep.subr.bf16.mxu0 0
    %157 = vmatpush1.bf16.xpose.msra.mxu0 0
    %158 = vmatprep.subr.bf16.mxu0 0
    %159 = vmatpush1.bf16.xpose.msra.mxu0 0
    %160 = vmatprep.subr.bf16.mxu0 0
    %161 = vmatpush1.bf16.xpose.msra.mxu0 0
    %162 = vmatprep.subr.bf16.mxu0 0
    %163 = vmatpush1.bf16.xpose.msra.mxu0 0
    %164 = vmatprep.subr.bf16.mxu0 0
    %165 = vmatpush1.bf16.xpose.msra.mxu0 0
    %166 = vmatprep.subr.bf16.mxu0 0
    %167 = vmatpush1.bf16.xpose.msra.mxu0 0
    %168 = vmatprep.subr.bf16.mxu0 0
    %169 = vmatpush1.bf16.xpose.msra.mxu0 0
    %170 = vmatprep.subr.bf16.mxu0 0
    %171 = vmatpush1.bf16.xpose.msra.mxu0 0
    %172 = vmatprep.subr.bf16.mxu0 0
    %173 = vmatpush1.bf16.xpose.msra.mxu0 0
    %174 = vmatprep.subr.bf16.mxu0 0
    %175 = vmatpush1.bf16.xpose.msra.mxu0 0
    %176 = vmatprep.subr.bf16.mxu0 0
    %177 = vmatpush1.bf16.xpose.msra.mxu0 0
    %178 = vmatprep.subr.bf16.mxu0 0
    %179 = vmatpush1.bf16.xpose.msra.mxu0 0
    %180 = vmatprep.subr.bf16.mxu0 0
    %181 = vmatpush1.bf16.xpose.msra.mxu0 0
    %182 = vmatprep.subr.bf16.mxu0 0
    %183 = vmatpush1.bf16.xpose.msra.mxu0 0
    %184 = vmatprep.subr.bf16.mxu0 0
    %185 = vmatpush1.bf16.xpose.msra.mxu0 0
    %186 = vmatprep.mubr.bf16.mxu0 0
    %187 = vmatmul.mubr.bf16.gmra.mrb[0].mxu0 %v149
    %v188 = vpop.f32.mrb[0].mxu0
    %v189 = vadd.f32 0.0, %v188
    %v190 = vpop.f32.mrb[0].mxu0
    %v191 = vpop.f32.mrb[0].mxu0
    %v192 = vadd.f32 0.0, %v191
    %v193 = vpop.f32.mrb[0].mxu0
    %194 = vdwg.mxu0
    %195 = vrot.lane.b32.xlu0 %v143, 120
    %v196 = vpop.permute.xlu0 %195
    %197 = vrot.lane.b32.xlu0 %v143, 88
    %v198 = vpop.permute.xlu0 %197
    %v200 = vsel %vm147, %v196, 0
    %v203 = vsel %vm147, %v198, 0
    %205 = vmatprep.subr.bf16.mxu0 0
    %206 = vmatpush1.bf16.xpose.msra.mxu0 %v203
    %207 = vmatprep.subr.bf16.mxu0 0
    %208 = vmatpush1.bf16.xpose.msra.mxu0 0
    %209 = vmatprep.subr.bf16.mxu0 0
    %210 = vmatpush1.bf16.xpose.msra.mxu0 0
    %211 = vmatprep.subr.bf16.mxu0 0
    %212 = vmatpush1.bf16.xpose.msra.mxu0 0
    %213 = vmatprep.subr.bf16.mxu0 0
    %214 = vmatpush1.bf16.xpose.msra.mxu0 0
    %215 = vmatprep.subr.bf16.mxu0 0
    %216 = vmatpush1.bf16.xpose.msra.mxu0 0
    %217 = vmatprep.subr.bf16.mxu0 0
    %218 = vmatpush1.bf16.xpose.msra.mxu0 0
    %219 = vmatprep.subr.bf16.mxu0 0
    %220 = vmatpush1.bf16.xpose.msra.mxu0 0
    %221 = vmatprep.subr.bf16.mxu0 0
    %222 = vmatpush1.bf16.xpose.msra.mxu0 0
    %223 = vmatprep.subr.bf16.mxu0 0
    %224 = vmatpush1.bf16.xpose.msra.mxu0 0
    %225 = vmatprep.subr.bf16.mxu0 0
    %226 = vmatpush1.bf16.xpose.msra.mxu0 0
    %227 = vmatprep.subr.bf16.mxu0 0
    %228 = vmatpush1.bf16.xpose.msra.mxu0 0
    %229 = vmatprep.subr.bf16.mxu0 0
    %230 = vmatpush1.bf16.xpose.msra.mxu0 0
    %231 = vmatprep.subr.bf16.mxu0 0
    %232 = vmatpush1.bf16.xpose.msra.mxu0 0
    %233 = vmatprep.subr.bf16.mxu0 0
    %234 = vmatpush1.bf16.xpose.msra.mxu0 0
    %235 = vmatprep.subr.bf16.mxu0 0
    %236 = vmatpush1.bf16.xpose.msra.mxu0 0
    %237 = vmatprep.mubr.bf16.mxu0 0
    %238 = vmatmul.mubr.bf16.gmra.mrb[0].mxu0 %v200
    %v239 = vpop.f32.mrb[0].mxu0
    %v240 = vadd.f32 0.0, %v239
    %v241 = vpop.f32.mrb[0].mxu0
    %v242 = vpop.f32.mrb[0].mxu0
    %v243 = vadd.f32 0.0, %v242
    %v244 = vpop.f32.mrb[0].mxu0
    %245 = vdwg.mxu0
    %246 = vrot.lane.b32.xlu0 %v143, 112
    %v247 = vpop.permute.xlu0 %246
    %248 = vrot.lane.b32.xlu0 %v143, 80
    %v249 = vpop.permute.xlu0 %248
    %v251 = vsel %vm147, %v247, 0
    %v254 = vsel %vm147, %v249, 0
    %256 = vmatprep.subr.bf16.mxu0 0
    %257 = vmatpush1.bf16.xpose.msra.mxu0 %v254
    %258 = vmatprep.subr.bf16.mxu0 0
    %259 = vmatpush1.bf16.xpose.msra.mxu0 0
    %260 = vmatprep.subr.bf16.mxu0 0
    %261 = vmatpush1.bf16.xpose.msra.mxu0 0
    %262 = vmatprep.subr.bf16.mxu0 0
    %263 = vmatpush1.bf16.xpose.msra.mxu0 0
    %264 = vmatprep.subr.bf16.mxu0 0
    %265 = vmatpush1.bf16.xpose.msra.mxu0 0
    %266 = vmatprep.subr.bf16.mxu0 0
    %267 = vmatpush1.bf16.xpose.msra.mxu0 0
    %268 = vmatprep.subr.bf16.mxu0 0
    %269 = vmatpush1.bf16.xpose.msra.mxu0 0
    %270 = vmatprep.subr.bf16.mxu0 0
    %271 = vmatpush1.bf16.xpose.msra.mxu0 0
    %272 = vmatprep.subr.bf16.mxu0 0
    %273 = vmatpush1.bf16.xpose.msra.mxu0 0
    %274 = vmatprep.subr.bf16.mxu0 0
    %275 = vmatpush1.bf16.xpose.msra.mxu0 0
    %276 = vmatprep.subr.bf16.mxu0 0
    %277 = vmatpush1.bf16.xpose.msra.mxu0 0
    %278 = vmatprep.subr.bf16.mxu0 0
    %279 = vmatpush1.bf16.xpose.msra.mxu0 0
    %280 = vmatprep.subr.bf16.mxu0 0
    %281 = vmatpush1.bf16.xpose.msra.mxu0 0
    %282 = vmatprep.subr.bf16.mxu0 0
    %283 = vmatpush1.bf16.xpose.msra.mxu0 0
    %284 = vmatprep.subr.bf16.mxu0 0
    %285 = vmatpush1.bf16.xpose.msra.mxu0 0
    %286 = vmatprep.subr.bf16.mxu0 0
    %287 = vmatpush1.bf16.xpose.msra.mxu0 0
    %288 = vmatprep.mubr.bf16.mxu0 0
    %289 = vmatmul.mubr.bf16.gmra.mrb[0].mxu0 %v251
    %v290 = vpop.f32.mrb[0].mxu0
    %v291 = vadd.f32 0.0, %v290
    %v292 = vpop.f32.mrb[0].mxu0
    %v293 = vpop.f32.mrb[0].mxu0
    %v294 = vadd.f32 0.0, %v293
    %v295 = vpop.f32.mrb[0].mxu0
    %296 = vdwg.mxu0
    %297 = vrot.lane.b32.xlu0 %v143, 104
    %v298 = vpop.permute.xlu0 %297
    %299 = vrot.lane.b32.xlu0 %v143, 72
    %v300 = vpop.permute.xlu0 %299
    %v302 = vsel %vm147, %v298, 0
    %v305 = vsel %vm147, %v300, 0
    %307 = vmatprep.subr.bf16.mxu0 0
    %308 = vmatpush1.bf16.xpose.msra.mxu0 %v305
    %309 = vmatprep.subr.bf16.mxu0 0
    %310 = vmatpush1.bf16.xpose.msra.mxu0 0
    %311 = vmatprep.subr.bf16.mxu0 0
    %312 = vmatpush1.bf16.xpose.msra.mxu0 0
    %313 = vmatprep.subr.bf16.mxu0 0
    %314 = vmatpush1.bf16.xpose.msra.mxu0 0
    %315 = vmatprep.subr.bf16.mxu0 0
    %316 = vmatpush1.bf16.xpose.msra.mxu0 0
    %317 = vmatprep.subr.bf16.mxu0 0
    %318 = vmatpush1.bf16.xpose.msra.mxu0 0
    %319 = vmatprep.subr.bf16.mxu0 0
    %320 = vmatpush1.bf16.xpose.msra.mxu0 0
    %321 = vmatprep.subr.bf16.mxu0 0
    %322 = vmatpush1.bf16.xpose.msra.mxu0 0
    %323 = vmatprep.subr.bf16.mxu0 0
    %324 = vmatpush1.bf16.xpose.msra.mxu0 0
    %325 = vmatprep.subr.bf16.mxu0 0
    %326 = vmatpush1.bf16.xpose.msra.mxu0 0
    %327 = vmatprep.subr.bf16.mxu0 0
    %328 = vmatpush1.bf16.xpose.msra.mxu0 0
    %329 = vmatprep.subr.bf16.mxu0 0
    %330 = vmatpush1.bf16.xpose.msra.mxu0 0
    %331 = vmatprep.subr.bf16.mxu0 0
    %332 = vmatpush1.bf16.xpose.msra.mxu0 0
    %333 = vmatprep.subr.bf16.mxu0 0
    %334 = vmatpush1.bf16.xpose.msra.mxu0 0
    %335 = vmatprep.subr.bf16.mxu0 0
    %336 = vmatpush1.bf16.xpose.msra.mxu0 0
    %337 = vmatprep.subr.bf16.mxu0 0
    %338 = vmatpush1.bf16.xpose.msra.mxu0 0
    %339 = vmatprep.mubr.bf16.mxu0 0
    %340 = vmatmul.mubr.bf16.gmra.mrb[0].mxu0 %v302
    %v341 = vpop.f32.mrb[0].mxu0
    %v342 = vadd.f32 0.0, %v341
    %v343 = vpop.f32.mrb[0].mxu0
    %v344 = vpop.f32.mrb[0].mxu0
    %v345 = vadd.f32 0.0, %v344
    %v346 = vpop.f32.mrb[0].mxu0
    %347 = vdwg.mxu0
    %350 = vrot.lane.b32.xlu0 %v240, 16
    %v351 = vpop.permute.xlu0 %350
    %352 = vrot.lane.b32.xlu0 %v243, 16
    %v353 = vpop.permute.xlu0 %352
    %358 = vrot.lane.b32.xlu0 %v291, 32
    %v359 = vpop.permute.xlu0 %358
    %360 = vrot.lane.b32.xlu0 %v294, 32
    %v361 = vpop.permute.xlu0 %360
    %366 = vrot.lane.b32.xlu0 %v342, 48
    %v367 = vpop.permute.xlu0 %366
    %368 = vrot.lane.b32.xlu0 %v345, 48
    %v369 = vpop.permute.xlu0 %368
    %vm372 = vcmask 130048
    %v373 = vsel %vm372, %v189, %v351
    %v374 = vsel %vm372, %v192, %v353
    %v375 = vsel %vm37, %v373, %v359
    %v376 = vsel %vm37, %v374, %v361
    %vm377 = vcmask 392192
    %v378 = vsel %vm377, %v375, %v367
    %v379 = vsel %vm377, %v376, %v369
    %v380 = vadd.f32 %v378, %v31
    %v381 = vadd.f32 %v379, %v32
    %vm382 = vcmask 523264
    %v383 = vsel %vm382, %v380, -inf
    %384 = vmax.xlane.f32.xlu0 %v383
    %v385 = vpop.xlane.xlu0 %384
    %v386 = vsel %vm382, %v381, -inf
    %387 = vmax.xlane.f32.xlu0 %v386
    %v388 = vpop.xlane.xlu0 %387
    %v389 = vsub.f32 %v380, %v385
    %v390 = vsub.f32 %v381, %v388
    %v391 = vmul.f32 %v389, 1.442695
    %v392 = vpow.pop %v391
    %v393 = vmul.f32 %v390, 1.442695
    %v394 = vpow.pop %v393
    %v395 = vpack.c.bf16 %v394, %v392
    %v396 = vsel %vm372, %v392, 0.0
    %397 = vadd.xlane.f32.xlu0 %v396
    %v398 = vpop.xlane.xlu0 %397
    %v399 = vsel %vm372, %v394, 0.0
    %400 = vadd.xlane.f32.xlu0 %v399
    %v401 = vpop.xlane.xlu0 %400
    %v402 = vrcp.pop %v398
    %v403 = vrcp.pop %v401
    %404 = vrot.lane.b32.xlu0 %v143, 64
    %v405 = vpop.permute.xlu0 %404
    %v408 = vsel %vm372, %v395, 0
    %410 = vmatprep.subr.bf16.mxu0 0
    %411 = vmatpush1.bf16.msra.mxu0 %v405
    %412 = vmatprep.subr.bf16.mxu0 0
    %413 = vmatpush1.bf16.msra.mxu0 0
    %414 = vmatprep.subr.bf16.mxu0 0
    %415 = vmatpush1.bf16.msra.mxu0 0
    %416 = vmatprep.subr.bf16.mxu0 0
    %417 = vmatpush1.bf16.msra.mxu0 0
    %418 = vmatprep.subr.bf16.mxu0 0
    %419 = vmatpush1.bf16.msra.mxu0 0
    %420 = vmatprep.subr.bf16.mxu0 0
    %421 = vmatpush1.bf16.msra.mxu0 0
    %422 = vmatprep.subr.bf16.mxu0 0
    %423 = vmatpush1.bf16.msra.mxu0 0
    %424 = vmatprep.subr.bf16.mxu0 0
    %425 = vmatpush1.bf16.msra.mxu0 0
    %426 = vmatprep.subr.bf16.mxu0 0
    %427 = vmatpush1.bf16.msra.mxu0 0
    %428 = vmatprep.subr.bf16.mxu0 0
    %429 = vmatpush1.bf16.msra.mxu0 0
    %430 = vmatprep.subr.bf16.mxu0 0
    %431 = vmatpush1.bf16.msra.mxu0 0
    %432 = vmatprep.subr.bf16.mxu0 0
    %433 = vmatpush1.bf16.msra.mxu0 0
    %434 = vmatprep.subr.bf16.mxu0 0
    %435 = vmatpush1.bf16.msra.mxu0 0
    %436 = vmatprep.subr.bf16.mxu0 0
    %437 = vmatpush1.bf16.msra.mxu0 0
    %438 = vmatprep.subr.bf16.mxu0 0
    %439 = vmatpush1.bf16.msra.mxu0 0
    %440 = vmatprep.subr.bf16.mxu0 0
    %441 = vmatpush1.bf16.msra.mxu0 0
    %442 = vmatprep.mubr.bf16.mxu0 0
    %443 = vmatmul.mubr.bf16.gmra.mrb[0].mxu0 %v408
    %v444 = vpop.f32.mrb[0].mxu0
    %v445 = vadd.f32 0.0, %v444
    %v446 = vpop.f32.mrb[0].mxu0
    %v447 = vpop.f32.mrb[0].mxu0
    %v448 = vadd.f32 0.0, %v447
    %v449 = vpop.f32.mrb[0].mxu0
    %450 = vdwg.mxu0
    %v451 = vmul.f32 %v445, %v402
    %v452 = vmul.f32 %v448, %v403
    %455 = vrot.lane.b32.xlu0 %v392, 112
    %v456 = vpop.permute.xlu0 %455
    %457 = vrot.lane.b32.xlu0 %v394, 112
    %v458 = vpop.permute.xlu0 %457
    %v461 = vsel %vm372, %v456, 0.0
    %462 = vadd.xlane.f32.xlu0 %v461
    %v463 = vpop.xlane.xlu0 %462
    %v464 = vsel %vm372, %v458, 0.0
    %465 = vadd.xlane.f32.xlu0 %v464
    %v466 = vpop.xlane.xlu0 %465
    %v467 = vrcp.pop %v463
    %v468 = vrcp.pop %v466
    %470 = vrot.lane.b32.xlu0 %v395, 112
    %v471 = vpop.permute.xlu0 %470
    %472 = vrot.lane.b32.xlu0 %v143, 56
    %v473 = vpop.permute.xlu0 %472
    %v476 = vsel %vm372, %v471, 0
    %478 = vmatprep.subr.bf16.mxu0 0
    %479 = vmatpush1.bf16.msra.mxu0 %v473
    %480 = vmatprep.subr.bf16.mxu0 0
    %481 = vmatpush1.bf16.msra.mxu0 0
    %482 = vmatprep.subr.bf16.mxu0 0
    %483 = vmatpush1.bf16.msra.mxu0 0
    %484 = vmatprep.subr.bf16.mxu0 0
    %485 = vmatpush1.bf16.msra.mxu0 0
    %486 = vmatprep.subr.bf16.mxu0 0
    %487 = vmatpush1.bf16.msra.mxu0 0
    %488 = vmatprep.subr.bf16.mxu0 0
    %489 = vmatpush1.bf16.msra.mxu0 0
    %490 = vmatprep.subr.bf16.mxu0 0
    %491 = vmatpush1.bf16.msra.mxu0 0
    %492 = vmatprep.subr.bf16.mxu0 0
    %493 = vmatpush1.bf16.msra.mxu0 0
    %494 = vmatprep.subr.bf16.mxu0 0
    %495 = vmatpush1.bf16.msra.mxu0 0
    %496 = vmatprep.subr.bf16.mxu0 0
    %497 = vmatpush1.bf16.msra.mxu0 0
    %498 = vmatprep.subr.bf16.mxu0 0
    %499 = vmatpush1.bf16.msra.mxu0 0
    %500 = vmatprep.subr.bf16.mxu0 0
    %501 = vmatpush1.bf16.msra.mxu0 0
    %502 = vmatprep.subr.bf16.mxu0 0
    %503 = vmatpush1.bf16.msra.mxu0 0
    %504 = vmatprep.subr.bf16.mxu0 0
    %505 = vmatpush1.bf16.msra.mxu0 0
    %506 = vmatprep.subr.bf16.mxu0 0
    %507 = vmatpush1.bf16.msra.mxu0 0
    %508 = vmatprep.subr.bf16.mxu0 0
    %509 = vmatpush1.bf16.msra.mxu0 0
    %510 = vmatprep.mubr.bf16.mxu0 0
    %511 = vmatmul.mubr.bf16.gmra.mrb[0].mxu0 %v476
    %v512 = vpop.f32.mrb[0].mxu0
    %v513 = vadd.f32 0.0, %v512
    %v514 = vpop.f32.mrb[0].mxu0
    %v515 = vpop.f32.mrb[0].mxu0
    %v516 = vadd.f32 0.0, %v515
    %v517 = vpop.f32.mrb[0].mxu0
    %518 = vdwg.mxu0
    %v519 = vmul.f32 %v513, %v467
    %v520 = vmul.f32 %v516, %v468
    %521 = vrot.lane.b32.xlu0 %v392, 96
    %v522 = vpop.permute.xlu0 %521
    %523 = vrot.lane.b32.xlu0 %v394, 96
    %v524 = vpop.permute.xlu0 %523
    %v527 = vsel %vm372, %v522, 0.0
    %528 = vadd.xlane.f32.xlu0 %v527
    %v529 = vpop.xlane.xlu0 %528
    %v530 = vsel %vm372, %v524, 0.0
    %531 = vadd.xlane.f32.xlu0 %v530
    %v532 = vpop.xlane.xlu0 %531
    %v533 = vrcp.pop %v529
    %v534 = vrcp.pop %v532
    %535 = vrot.lane.b32.xlu0 %v395, 96
    %v536 = vpop.permute.xlu0 %535
    %537 = vrot.lane.b32.xlu0 %v143, 48
    %v538 = vpop.permute.xlu0 %537
    %v541 = vsel %vm372, %v536, 0
    %543 = vmatprep.subr.bf16.mxu0 0
    %544 = vmatpush1.bf16.msra.mxu0 %v538
    %545 = vmatprep.subr.bf16.mxu0 0
    %546 = vmatpush1.bf16.msra.mxu0 0
    %547 = vmatprep.subr.bf16.mxu0 0
    %548 = vmatpush1.bf16.msra.mxu0 0
    %549 = vmatprep.subr.bf16.mxu0 0
    %550 = vmatpush1.bf16.msra.mxu0 0
    %551 = vmatprep.subr.bf16.mxu0 0
    %552 = vmatpush1.bf16.msra.mxu0 0
    %553 = vmatprep.subr.bf16.mxu0 0
    %554 = vmatpush1.bf16.msra.mxu0 0
    %555 = vmatprep.subr.bf16.mxu0 0
    %556 = vmatpush1.bf16.msra.mxu0 0
    %557 = vmatprep.subr.bf16.mxu0 0
    %558 = vmatpush1.bf16.msra.mxu0 0
    %559 = vmatprep.subr.bf16.mxu0 0
    %560 = vmatpush1.bf16.msra.mxu0 0
    %561 = vmatprep.subr.bf16.mxu0 0
    %562 = vmatpush1.bf16.msra.mxu0 0
    %563 = vmatprep.subr.bf16.mxu0 0
    %564 = vmatpush1.bf16.msra.mxu0 0
    %565 = vmatprep.subr.bf16.mxu0 0
    %566 = vmatpush1.bf16.msra.mxu0 0
    %567 = vmatprep.subr.bf16.mxu0 0
    %568 = vmatpush1.bf16.msra.mxu0 0
    %569 = vmatprep.subr.bf16.mxu0 0
    %570 = vmatpush1.bf16.msra.mxu0 0
    %571 = vmatprep.subr.bf16.mxu0 0
    %572 = vmatpush1.bf16.msra.mxu0 0
    %573 = vmatprep.subr.bf16.mxu0 0
    %574 = vmatpush1.bf16.msra.mxu0 0
    %575 = vmatprep.mubr.bf16.mxu0 0
    %576 = vmatmul.mubr.bf16.gmra.mrb[0].mxu0 %v541
    %v577 = vpop.f32.mrb[0].mxu0
    %v578 = vadd.f32 0.0, %v577
    %v579 = vpop.f32.mrb[0].mxu0
    %v580 = vpop.f32.mrb[0].mxu0
    %v581 = vadd.f32 0.0, %v580
    %v582 = vpop.f32.mrb[0].mxu0
    %583 = vdwg.mxu0
    %v584 = vmul.f32 %v578, %v533
    %v585 = vmul.f32 %v581, %v534
    %586 = vrot.lane.b32.xlu0 %v392, 80
    %v587 = vpop.permute.xlu0 %586
    %588 = vrot.lane.b32.xlu0 %v394, 80
    %v589 = vpop.permute.xlu0 %588
    %v592 = vsel %vm372, %v587, 0.0
    %593 = vadd.xlane.f32.xlu0 %v592
    %v594 = vpop.xlane.xlu0 %593
    %v595 = vsel %vm372, %v589, 0.0
    %596 = vadd.xlane.f32.xlu0 %v595
    %v597 = vpop.xlane.xlu0 %596
    %v598 = vrcp.pop %v594
    %v599 = vrcp.pop %v597
    %600 = vrot.lane.b32.xlu0 %v395, 80
    %v601 = vpop.permute.xlu0 %600
    %602 = vrot.lane.b32.xlu0 %v143, 40
    %v603 = vpop.permute.xlu0 %602
    %v606 = vsel %vm372, %v601, 0
    %608 = vmatprep.subr.bf16.mxu0 0
    %609 = vmatpush1.bf16.msra.mxu0 %v603
    %610 = vmatprep.subr.bf16.mxu0 0
    %611 = vmatpush1.bf16.msra.mxu0 0
    %612 = vmatprep.subr.bf16.mxu0 0
    %613 = vmatpush1.bf16.msra.mxu0 0
    %614 = vmatprep.subr.bf16.mxu0 0
    %615 = vmatpush1.bf16.msra.mxu0 0
    %616 = vmatprep.subr.bf16.mxu0 0
    %617 = vmatpush1.bf16.msra.mxu0 0
    %618 = vmatprep.subr.bf16.mxu0 0
    %619 = vmatpush1.bf16.msra.mxu0 0
    %620 = vmatprep.subr.bf16.mxu0 0
    %621 = vmatpush1.bf16.msra.mxu0 0
    %622 = vmatprep.subr.bf16.mxu0 0
    %623 = vmatpush1.bf16.msra.mxu0 0
    %624 = vmatprep.subr.bf16.mxu0 0
    %625 = vmatpush1.bf16.msra.mxu0 0
    %626 = vmatprep.subr.bf16.mxu0 0
    %627 = vmatpush1.bf16.msra.mxu0 0
    %628 = vmatprep.subr.bf16.mxu0 0
    %629 = vmatpush1.bf16.msra.mxu0 0
    %630 = vmatprep.subr.bf16.mxu0 0
    %631 = vmatpush1.bf16.msra.mxu0 0
    %632 = vmatprep.subr.bf16.mxu0 0
    %633 = vmatpush1.bf16.msra.mxu0 0
    %634 = vmatprep.subr.bf16.mxu0 0
    %635 = vmatpush1.bf16.msra.mxu0 0
    %636 = vmatprep.subr.bf16.mxu0 0
    %637 = vmatpush1.bf16.msra.mxu0 0
    %638 = vmatprep.subr.bf16.mxu0 0
    %639 = vmatpush1.bf16.msra.mxu0 0
    %640 = vmatprep.mubr.bf16.mxu0 0
    %641 = vmatmul.mubr.bf16.gmra.mrb[0].mxu0 %v606
    %v642 = vpop.f32.mrb[0].mxu0
    %v643 = vadd.f32 0.0, %v642
    %v644 = vpop.f32.mrb[0].mxu0
    %v645 = vpop.f32.mrb[0].mxu0
    %v646 = vadd.f32 0.0, %v645
    %v647 = vpop.f32.mrb[0].mxu0
    %648 = vdwg.mxu0
    %v649 = vmul.f32 %v643, %v598
    %v650 = vmul.f32 %v646, %v599
    %653 = vrot.lane.b32.xlu0 %v519, 8
    %v654 = vpop.permute.xlu0 %653
    %655 = vrot.lane.b32.xlu0 %v520, 8
    %v656 = vpop.permute.xlu0 %655
    %661 = vrot.lane.b32.xlu0 %v584, 16
    %v662 = vpop.permute.xlu0 %661
    %663 = vrot.lane.b32.xlu0 %v585, 16
    %v664 = vpop.permute.xlu0 %663
    %669 = vrot.lane.b32.xlu0 %v649, 24
    %v670 = vpop.permute.xlu0 %669
    %671 = vrot.lane.b32.xlu0 %v650, 24
    %v672 = vpop.permute.xlu0 %671
    %v675 = vsel %vm147, %v451, %v654
    %v676 = vsel %vm147, %v452, %v656
    %v677 = vsel %vm372, %v675, %v662
    %v678 = vsel %vm372, %v676, %v664
    %vm679 = vcmask 195584
    %v680 = vsel %vm679, %v677, %v670
    %v681 = vsel %vm679, %v678, %v672
    %v682 = vpack.c.bf16 %v681, %v680
    %v683 = vld [vmem:[%s4] sm:$0xf]
    %v684 = vld [vmem:[%s4 + $0x4] sm:$0xf]
    %v685 = vld [vmem:[%s4 + $0x8] sm:$0xf]
    %v686 = vld [vmem:[%s4 + $0xc] sm:$0xf]
    %v687 = vld [vmem:[%s2 + $0x4] sm:$0x1]
    %v688 = vlaneseq
    %v689 = vshrl.u32 %v688, 7
    %v690 = vsub.s32 0, %v689
    %v691 = vrot.slane %v687, %v690
    %v696 = vunpack.c.l.b16 %v683
    %v697 = vunpack.c.l.b16 %v684
    %v698 = vunpack.c.l.b16 %v685
    %v699 = vunpack.c.l.b16 %v686
    %v700 = vpack.c.b16 %v697, %v696
    %v701 = vpack.c.b16 %v699, %v698
    %v705 = vsel %vm37, %v682, 0
    %707 = vmatprep.subr.bf16.mxu0 0
    %708 = vmatpush1.bf16.msra.mxu0 %v700
    %709 = vmatprep.subr.bf16.mxu0 0
    %710 = vmatpush1.bf16.msra.mxu0 %v701
    %711 = vmatprep.subr.bf16.mxu0 0
    %712 = vmatpush1.bf16.msra.mxu0 0
    %713 = vmatprep.subr.bf16.mxu0 0
    %714 = vmatpush1.bf16.msra.mxu0 0
    %715 = vmatprep.subr.bf16.mxu0 0
    %716 = vmatpush1.bf16.msra.mxu0 0
    %717 = vmatprep.subr.bf16.mxu0 0
    %718 = vmatpush1.bf16.msra.mxu0 0
    %719 = vmatprep.subr.bf16.mxu0 0
    %720 = vmatpush1.bf16.msra.mxu0 0
    %721 = vmatprep.subr.bf16.mxu0 0
    %722 = vmatpush1.bf16.msra.mxu0 0
    %723 = vmatprep.subr.bf16.mxu0 0
    %724 = vmatpush1.bf16.msra.mxu0 0
    %725 = vmatprep.subr.bf16.mxu0 0
    %726 = vmatpush1.bf16.msra.mxu0 0
    %727 = vmatprep.subr.bf16.mxu0 0
    %728 = vmatpush1.bf16.msra.mxu0 0
    %729 = vmatprep.subr.bf16.mxu0 0
    %730 = vmatpush1.bf16.msra.mxu0 0
    %731 = vmatprep.subr.bf16.mxu0 0
    %732 = vmatpush1.bf16.msra.mxu0 0
    %733 = vmatprep.subr.bf16.mxu0 0
    %734 = vmatpush1.bf16.msra.mxu0 0
    %735 = vmatprep.subr.bf16.mxu0 0
    %736 = vmatpush1.bf16.msra.mxu0 0
    %737 = vmatprep.subr.bf16.mxu0 0
    %738 = vmatpush1.bf16.msra.mxu0 0
    %739 = vmatprep.mubr.bf16.mxu0 0
    %740 = vmatmul.mubr.bf16.gmra.mrb[0].mxu0 %v705
    %v741 = vpop.f32.mrb[0].mxu0
    %v742 = vadd.f32 %v691, %v741
    %v743 = vpop.f32.mrb[0].mxu0
    %v744 = vpop.f32.mrb[0].mxu0
    %v745 = vadd.f32 %v691, %v744
    %v746 = vpop.f32.mrb[0].mxu0
    %747 = vdwg.mxu0
    %v748 = vadd.f32 %v742, %v75
    %v749 = vadd.f32 %v745, %v76
    %v750 = vld [vmem:[%s2 + $0x5] sm:$0x1]
    %v751 = vld [vmem:[%s2 + $0x6] sm:$0x1]
    %v752 = vsel %vm37, %v748, 0.0
    %753 = vadd.xlane.f32.xlu0 %v752
    %v754 = vpop.xlane.xlu0 %753
    %v755 = vsel %vm37, %v749, 0.0
    %756 = vadd.xlane.f32.xlu0 %v755
    %v757 = vpop.xlane.xlu0 %756
    %v758 = vmul.f32 %v754, %v44
    %v759 = vmul.f32 %v757, %v44
    %v760 = vsub.f32 %v748, %v758
    %v761 = vsub.f32 %v749, %v759
    %v762 = vmul.f32 %v760, %v760
    %v763 = vmul.f32 %v761, %v761
    %v764 = vsel %vm37, %v762, 0.0
    %765 = vadd.xlane.f32.xlu0 %v764
    %v766 = vpop.xlane.xlu0 %765
    %v767 = vsel %vm37, %v763, 0.0
    %768 = vadd.xlane.f32.xlu0 %v767
    %v769 = vpop.xlane.xlu0 %768
    %v770 = vmul.f32 %v766, %v44
    %v771 = vmul.f32 %v769, %v44
    %v772 = vadd.f32 %v770, 1e-12
    %v773 = vadd.f32 %v771, 1e-12
    %v774 = vrsqrt.pop %v772
    %v775 = vrsqrt.pop %v773
    %v776 = vmul.f32 %v760, %v774
    %v777 = vmul.f32 %v761, %v775
    %v778 = vlaneseq
    %v779 = vshrl.u32 %v778, 7
    %v780 = vsub.s32 0, %v779
    %v781 = vrot.slane %v750, %v780
    %v782 = vmul.f32 %v776, %v781
    %v783 = vmul.f32 %v777, %v781
    %v784 = vlaneseq
    %v785 = vshrl.u32 %v784, 7
    %v786 = vsub.s32 0, %v785
    %v787 = vrot.slane %v751, %v786
    %v788 = vadd.f32 %v782, %v787
    %v789 = vadd.f32 %v783, %v787
    %v790 = vpack.c.bf16 %v789, %v788
    %v791 = vld [vmem:[%s5] sm:$0xf]
    %v792 = vld [vmem:[%s5 + $0x4] sm:$0xf]
    %v793 = vld [vmem:[%s5 + $0x8] sm:$0xf]
    %v794 = vld [vmem:[%s5 + $0xc] sm:$0xf]
    %v795 = vld [vmem:[%s2 + $0x7] sm:$0x1]
    %v796 = vlaneseq
    %v797 = vshrl.u32 %v796, 7
    %v798 = vsub.s32 0, %v797
    %v799 = vrot.slane %v795, %v798
    %v804 = vunpack.c.l.b16 %v791
    %v805 = vunpack.c.l.b16 %v792
    %v806 = vunpack.c.l.b16 %v793
    %v807 = vunpack.c.l.b16 %v794
    %v808 = vpack.c.b16 %v805, %v804
    %v809 = vpack.c.b16 %v807, %v806
    %v813 = vsel %vm37, %v790, 0
    %815 = vmatprep.subr.bf16.mxu0 0
    %816 = vmatpush1.bf16.msra.mxu0 %v808
    %817 = vmatprep.subr.bf16.mxu0 0
    %818 = vmatpush1.bf16.msra.mxu0 %v809
    %819 = vmatprep.subr.bf16.mxu0 0
    %820 = vmatpush1.bf16.msra.mxu0 0
    %821 = vmatprep.subr.bf16.mxu0 0
    %822 = vmatpush1.bf16.msra.mxu0 0
    %823 = vmatprep.subr.bf16.mxu0 0
    %824 = vmatpush1.bf16.msra.mxu0 0
    %825 = vmatprep.subr.bf16.mxu0 0
    %826 = vmatpush1.bf16.msra.mxu0 0
    %827 = vmatprep.subr.bf16.mxu0 0
    %828 = vmatpush1.bf16.msra.mxu0 0
    %829 = vmatprep.subr.bf16.mxu0 0
    %830 = vmatpush1.bf16.msra.mxu0 0
    %831 = vmatprep.subr.bf16.mxu0 0
    %832 = vmatpush1.bf16.msra.mxu0 0
    %833 = vmatprep.subr.bf16.mxu0 0
    %834 = vmatpush1.bf16.msra.mxu0 0
    %835 = vmatprep.subr.bf16.mxu0 0
    %836 = vmatpush1.bf16.msra.mxu0 0
    %837 = vmatprep.subr.bf16.mxu0 0
    %838 = vmatpush1.bf16.msra.mxu0 0
    %839 = vmatprep.subr.bf16.mxu0 0
    %840 = vmatpush1.bf16.msra.mxu0 0
    %841 = vmatprep.subr.bf16.mxu0 0
    %842 = vmatpush1.bf16.msra.mxu0 0
    %843 = vmatprep.subr.bf16.mxu0 0
    %844 = vmatpush1.bf16.msra.mxu0 0
    %845 = vmatprep.subr.bf16.mxu0 0
    %846 = vmatpush1.bf16.msra.mxu0 0
    %847 = vmatprep.mubr.bf16.mxu0 0
    %848 = vmatmul.mubr.bf16.gmra.mrb[0].mxu0 %v813
    %v849 = vpop.f32.mrb[0].mxu0
    %v850 = vadd.f32 %v799, %v849
    %v851 = vpop.f32.mrb[0].mxu0
    %v852 = vpop.f32.mrb[0].mxu0
    %v853 = vadd.f32 %v799, %v852
    %v854 = vpop.f32.mrb[0].mxu0
    %855 = vdwg.mxu0
    %v856 = vmul.f32 %v850, %v850
    %v857 = vmul.f32 %v853, %v853
    %v858 = vmul.f32 %v850, %v856
    %v859 = vmul.f32 %v853, %v857
    %v860 = vmul.f32 %v858, 0.044715
    %v861 = vmul.f32 %v859, 0.044715
    %v862 = vadd.f32 %v850, %v860
    %v863 = vadd.f32 %v853, %v861
    %v864 = vmul.f32 %v862, 0.7978846
    %v865 = vmul.f32 %v863, 0.7978846
    %v866 = vtanh.pop %v864
    %v867 = vtanh.pop %v865
    %v868 = vadd.f32 %v866, 1.0
    %v869 = vadd.f32 %v867, 1.0
    %v870 = vmul.f32 %v868, 0.5
    %v871 = vmul.f32 %v869, 0.5
    %v872 = vmul.f32 %v850, %v870
    %v873 = vmul.f32 %v853, %v871
    %v874 = vpack.c.bf16 %v873, %v872
    %v875 = vld [vmem:[%s6] sm:$0xf]
    %v876 = vld [vmem:[%s6 + $0x4] sm:$0xf]
    %v877 = vld [vmem:[%s6 + $0x8] sm:$0xf]
    %v878 = vld [vmem:[%s6 + $0xc] sm:$0xf]
    %v879 = vld [vmem:[%s6 + $0x10] sm:$0xf]
    %v880 = vld [vmem:[%s6 + $0x14] sm:$0xf]
    %v881 = vld [vmem:[%s6 + $0x18] sm:$0xf]
    %v882 = vld [vmem:[%s6 + $0x1c] sm:$0xf]
    %v883 = vld [vmem:[%s2 + $0x8] sm:$0x1]
    %v884 = vlaneseq
    %v885 = vshrl.u32 %v884, 7
    %v886 = vsub.s32 0, %v885
    %v887 = vrot.slane %v883, %v886
    %v896 = vunpack.c.l.b16 %v875
    %v897 = vunpack.c.l.b16 %v876
    %v898 = vunpack.c.l.b16 %v877
    %v899 = vunpack.c.l.b16 %v878
    %v900 = vunpack.c.l.b16 %v879
    %v901 = vunpack.c.l.b16 %v880
    %v902 = vunpack.c.l.b16 %v881
    %v903 = vunpack.c.l.b16 %v882
    %v904 = vpack.c.b16 %v897, %v896
    %v905 = vpack.c.b16 %v899, %v898
    %v906 = vpack.c.b16 %v901, %v900
    %v907 = vpack.c.b16 %v903, %v902
    %v913 = vsel %vm382, %v874, 0
    %915 = vmatprep.subr.bf16.mxu0 0
    %916 = vmatpush1.bf16.msra.mxu0 %v904
    %917 = vmatprep.subr.bf16.mxu0 0
    %918 = vmatpush1.bf16.msra.mxu0 %v905
    %919 = vmatprep.subr.bf16.mxu0 0
    %920 = vmatpush1.bf16.msra.mxu0 %v906
    %921 = vmatprep.subr.bf16.mxu0 0
    %922 = vmatpush1.bf16.msra.mxu0 %v907
    %923 = vmatprep.subr.bf16.mxu0 0
    %924 = vmatpush1.bf16.msra.mxu0 0
    %925 = vmatprep.subr.bf16.mxu0 0
    %926 = vmatpush1.bf16.msra.mxu0 0
    %927 = vmatprep.subr.bf16.mxu0 0
    %928 = vmatpush1.bf16.msra.mxu0 0
    %929 = vmatprep.subr.bf16.mxu0 0
    %930 = vmatpush1.bf16.msra.mxu0 0
    %931 = vmatprep.subr.bf16.mxu0 0
    %932 = vmatpush1.bf16.msra.mxu0 0
    %933 = vmatprep.subr.bf16.mxu0 0
    %934 = vmatpush1.bf16.msra.mxu0 0
    %935 = vmatprep.subr.bf16.mxu0 0
    %936 = vmatpush1.bf16.msra.mxu0 0
    %937 = vmatprep.subr.bf16.mxu0 0
    %938 = vmatpush1.bf16.msra.mxu0 0
    %939 = vmatprep.subr.bf16.mxu0 0
    %940 = vmatpush1.bf16.msra.mxu0 0
    %941 = vmatprep.subr.bf16.mxu0 0
    %942 = vmatpush1.bf16.msra.mxu0 0
    %943 = vmatprep.subr.bf16.mxu0 0
    %944 = vmatpush1.bf16.msra.mxu0 0
    %945 = vmatprep.subr.bf16.mxu0 0
    %946 = vmatpush1.bf16.msra.mxu0 0
    %947 = vmatprep.mubr.bf16.mxu0 0
    %948 = vmatmul.mubr.bf16.gmra.mrb[0].mxu0 %v913
    %v949 = vpop.f32.mrb[0].mxu0
    %v950 = vadd.f32 %v887, %v949
    %v951 = vpop.f32.mrb[0].mxu0
    %v952 = vpop.f32.mrb[0].mxu0
    %v953 = vadd.f32 %v887, %v952
    %v954 = vpop.f32.mrb[0].mxu0
    %955 = vdwg.mxu0
    %v956 = vadd.f32 %v950, %v788
    %v957 = vadd.f32 %v953, %v789
    %v958 = vld [vmem:[%s2 + $0x9] sm:$0x1]
    %v959 = vld [vmem:[%s2 + $0xa] sm:$0x1]
    %v960 = vsel %vm37, %v956, 0.0
    %961 = vadd.xlane.f32.xlu0 %v960
    %v962 = vpop.xlane.xlu0 %961
    %v963 = vsel %vm37, %v957, 0.0
    %964 = vadd.xlane.f32.xlu0 %v963
    %v965 = vpop.xlane.xlu0 %964
    %v966 = vmul.f32 %v962, %v44
    %v967 = vmul.f32 %v965, %v44
    %v968 = vsub.f32 %v956, %v966
    %v969 = vsub.f32 %v957, %v967
    %v970 = vmul.f32 %v968, %v968
    %v971 = vmul.f32 %v969, %v969
    %v972 = vsel %vm37, %v970, 0.0
    %973 = vadd.xlane.f32.xlu0 %v972
    %v974 = vpop.xlane.xlu0 %973
    %v975 = vsel %vm37, %v971, 0.0
    %976 = vadd.xlane.f32.xlu0 %v975
    %v977 = vpop.xlane.xlu0 %976
    %v978 = vmul.f32 %v974, %v44
    %v979 = vmul.f32 %v977, %v44
    %v980 = vadd.f32 %v978, 1e-12
    %v981 = vadd.f32 %v979, 1e-12
    %v982 = vrsqrt.pop %v980
    %v983 = vrsqrt.pop %v981
    %v984 = vmul.f32 %v968, %v982
    %v985 = vmul.f32 %v969, %v983
    %v986 = vlaneseq
    %v987 = vshrl.u32 %v986, 7
    %v988 = vsub.s32 0, %v987
    %v989 = vrot.slane %v958, %v988
    %v990 = vmul.f32 %v984, %v989
    %v991 = vmul.f32 %v985, %v989
    %v992 = vlaneseq
    %v993 = vshrl.u32 %v992, 7
    %v994 = vsub.s32 0, %v993
    %v995 = vrot.slane %v959, %v994
    %v996 = vadd.f32 %v990, %v995
    %v997 = vadd.f32 %v991, %v995
    %v998 = vpack.c.bf16 %v997, %v996
    %s999 = scalar_lea.vmem %s3, 16
    %v1000 = vld [vmem:[%s999] sm:$0xf]
    %v1001 = vld [vmem:[%s999 + $0x4] sm:$0xf]
    %v1002 = vld [vmem:[%s999 + $0x8] sm:$0xf]
    %v1003 = vld [vmem:[%s999 + $0xc] sm:$0xf]
    %v1004 = vld [vmem:[%s2 + $0xb] sm:$0x1]
    %v1005 = vlaneseq
    %v1006 = vshrl.u32 %v1005, 7
    %v1007 = vsub.s32 0, %v1006
    %v1008 = vrot.slane %v1004, %v1007
    %v1013 = vunpack.c.l.b16 %v1000
    %v1014 = vunpack.c.l.b16 %v1001
    %v1015 = vunpack.c.l.b16 %v1002
    %v1016 = vunpack.c.l.b16 %v1003
    %v1017 = vpack.c.b16 %v1014, %v1013
    %v1018 = vpack.c.b16 %v1016, %v1015
    %v1022 = vsel %vm37, %v998, 0
    %1024 = vmatprep.subr.bf16.mxu0 0
    %1025 = vmatpush1.bf16.msra.mxu0 %v1017
    %1026 = vmatprep.subr.bf16.mxu0 0
    %1027 = vmatpush1.bf16.msra.mxu0 %v1018
    %1028 = vmatprep.subr.bf16.mxu0 0
    %1029 = vmatpush1.bf16.msra.mxu0 0
    %1030 = vmatprep.subr.bf16.mxu0 0
    %1031 = vmatpush1.bf16.msra.mxu0 0
    %1032 = vmatprep.subr.bf16.mxu0 0
    %1033 = vmatpush1.bf16.msra.mxu0 0
    %1034 = vmatprep.subr.bf16.mxu0 0
    %1035 = vmatpush1.bf16.msra.mxu0 0
    %1036 = vmatprep.subr.bf16.mxu0 0
    %1037 = vmatpush1.bf16.msra.mxu0 0
    %1038 = vmatprep.subr.bf16.mxu0 0
    %1039 = vmatpush1.bf16.msra.mxu0 0
    %1040 = vmatprep.subr.bf16.mxu0 0
    %1041 = vmatpush1.bf16.msra.mxu0 0
    %1042 = vmatprep.subr.bf16.mxu0 0
    %1043 = vmatpush1.bf16.msra.mxu0 0
    %1044 = vmatprep.subr.bf16.mxu0 0
    %1045 = vmatpush1.bf16.msra.mxu0 0
    %1046 = vmatprep.subr.bf16.mxu0 0
    %1047 = vmatpush1.bf16.msra.mxu0 0
    %1048 = vmatprep.subr.bf16.mxu0 0
    %1049 = vmatpush1.bf16.msra.mxu0 0
    %1050 = vmatprep.subr.bf16.mxu0 0
    %1051 = vmatpush1.bf16.msra.mxu0 0
    %1052 = vmatprep.subr.bf16.mxu0 0
    %1053 = vmatpush1.bf16.msra.mxu0 0
    %1054 = vmatprep.subr.bf16.mxu0 0
    %1055 = vmatpush1.bf16.msra.mxu0 0
    %1056 = vmatprep.mubr.bf16.mxu0 0
    %1057 = vmatmul.mubr.bf16.gmra.mrb[0].mxu0 %v1022
    %v1058 = vpop.f32.mrb[0].mxu0
    %v1059 = vadd.f32 %v1008, %v1058
    %v1060 = vpop.f32.mrb[0].mxu0
    %v1061 = vpop.f32.mrb[0].mxu0
    %v1062 = vadd.f32 %v1008, %v1061
    %v1063 = vpop.f32.mrb[0].mxu0
    %1064 = vdwg.mxu0
    %v1065 = vpack.c.bf16 %v1062, %v1059
    %1067 = vrot.lane.b32.xlu0 %v1065, 96
    %v1068 = vpop.permute.xlu0 %1067
    %v1070 = vsel %vm147, %v1065, 0
    %v1073 = vsel %vm147, %v1068, 0
    %1075 = vmatprep.subr.bf16.mxu0 0
    %1076 = vmatpush1.bf16.xpose.msra.mxu0 %v1073
    %1077 = vmatprep.subr.bf16.mxu0 0
    %1078 = vmatpush1.bf16.xpose.msra.mxu0 0
    %1079 = vmatprep.subr.bf16.mxu0 0
    %1080 = vmatpush1.bf16.xpose.msra.mxu0 0
    %1081 = vmatprep.subr.bf16.mxu0 0
    %1082 = vmatpush1.bf16.xpose.msra.mxu0 0
    %1083 = vmatprep.subr.bf16.mxu0 0
    %1084 = vmatpush1.bf16.xpose.msra.mxu0 0
    %1085 = vmatprep.subr.bf16.mxu0 0
    %1086 = vmatpush1.bf16.xpose.msra.mxu0 0
    %1087 = vmatprep.subr.bf16.mxu0 0
    %1088 = vmatpush1.bf16.xpose.msra.mxu0 0
    %1089 = vmatprep.subr.bf16.mxu0 0
    %1090 = vmatpush1.bf16.xpose.msra.mxu0 0
    %1091 = vmatprep.subr.bf16.mxu0 0
    %1092 = vmatpush1.bf16.xpose.msra.mxu0 0
    %1093 = vmatprep.subr.bf16.mxu0 0
    %1094 = vmatpush1.bf16.xpose.msra.mxu0 0
    %1095 = vmatprep.subr.bf16.mxu0 0
    %1096 = vmatpush1.bf16.xpose.msra.mxu0 0
    %1097 = vmatprep.subr.bf16.mxu0 0
    %1098 = vmatpush1.bf16.xpose.msra.mxu0 0
    %1099 = vmatprep.subr.bf16.mxu0 0
    %1100 = vmatpush1.bf16.xpose.msra.mxu0 0
    %1101 = vmatprep.subr.bf16.mxu0 0
    %1102 = vmatpush1.bf16.xpose.msra.mxu0 0
    %1103 = vmatprep.subr.bf16.mxu0 0
    %1104 = vmatpush1.bf16.xpose.msra.mxu0 0
    %1105 = vmatprep.subr.bf16.mxu0 0
    %1106 = vmatpush1.bf16.xpose.msra.mxu0 0
    %1107 = vmatprep.mubr.bf16.mxu0 0
    %1108 = vmatmul.mubr.bf16.gmra.mrb[0].mxu0 %v1070
    %v1109 = vpop.f32.mrb[0].mxu0
    %v1110 = vadd.f32 0.0, %v1109
    %v1111 = vpop.f32.mrb[0].mxu0
    %v1112 = vpop.f32.mrb[0].mxu0
    %v1113 = vadd.f32 0.0, %v1112
    %v1114 = vpop.f32.mrb[0].mxu0
    %1115 = vdwg.mxu0
    %1116 = vrot.lane.b32.xlu0 %v1065, 120
    %v1117 = vpop.permute.xlu0 %1116
    %1118 = vrot.lane.b32.xlu0 %v1065, 88
    %v1119 = vpop.permute.xlu0 %1118
    %v1121 = vsel %vm147, %v1117, 0
    %v1124 = vsel %vm147, %v1119, 0
    %1126 = vmatprep.subr.bf16.mxu0 0
    %1127 = vmatpush1.bf16.xpose.msra.mxu0 %v1124
    %1128 = vmatprep.subr.bf16.mxu0 0
    %1129 = vmatpush1.bf16.xpose.msra.mxu0 0
    %1130 = vmatprep.subr.bf16.mxu0 0
    %1131 = vmatpush1.bf16.xpose.msra.mxu0 0
    %1132 = vmatprep.subr.bf16.mxu0 0
    %1133 = vmatpush1.bf16.xpose.msra.mxu0 0
    %1134 = vmatprep.subr.bf16.mxu0 0
    %1135 = vmatpush1.bf16.xpose.msra.mxu0 0
    %1136 = vmatprep.subr.bf16.mxu0 0
    %1137 = vmatpush1.bf16.xpose.msra.mxu0 0
    %1138 = vmatprep.subr.bf16.mxu0 0
    %1139 = vmatpush1.bf16.xpose.msra.mxu0 0
    %1140 = vmatprep.subr.bf16.mxu0 0
    %1141 = vmatpush1.bf16.xpose.msra.mxu0 0
    %1142 = vmatprep.subr.bf16.mxu0 0
    %1143 = vmatpush1.bf16.xpose.msra.mxu0 0
    %1144 = vmatprep.subr.bf16.mxu0 0
    %1145 = vmatpush1.bf16.xpose.msra.mxu0 0
    %1146 = vmatprep.subr.bf16.mxu0 0
    %1147 = vmatpush1.bf16.xpose.msra.mxu0 0
    %1148 = vmatprep.subr.bf16.mxu0 0
    %1149 = vmatpush1.bf16.xpose.msra.mxu0 0
    %1150 = vmatprep.subr.bf16.mxu0 0
    %1151 = vmatpush1.bf16.xpose.msra.mxu0 0
    %1152 = vmatprep.subr.bf16.mxu0 0
    %1153 = vmatpush1.bf16.xpose.msra.mxu0 0
    %1154 = vmatprep.subr.bf16.mxu0 0
    %1155 = vmatpush1.bf16.xpose.msra.mxu0 0
    %1156 = vmatprep.subr.bf16.mxu0 0
    %1157 = vmatpush1.bf16.xpose.msra.mxu0 0
    %1158 = vmatprep.mubr.bf16.mxu0 0
    %1159 = vmatmul.mubr.bf16.gmra.mrb[0].mxu0 %v1121
    %v1160 = vpop.f32.mrb[0].mxu0
    %v1161 = vadd.f32 0.0, %v1160
    %v1162 = vpop.f32.mrb[0].mxu0
    %v1163 = vpop.f32.mrb[0].mxu0
    %v1164 = vadd.f32 0.0, %v1163
    %v1165 = vpop.f32.mrb[0].mxu0
    %1166 = vdwg.mxu0
    %1167 = vrot.lane.b32.xlu0 %v1065, 112
    %v1168 = vpop.permute.xlu0 %1167
    %1169 = vrot.lane.b32.xlu0 %v1065, 80
    %v1170 = vpop.permute.xlu0 %1169
    %v1172 = vsel %vm147, %v1168, 0
    %v1175 = vsel %vm147, %v1170, 0
    %1177 = vmatprep.subr.bf16.mxu0 0
    %1178 = vmatpush1.bf16.xpose.msra.mxu0 %v1175
    %1179 = vmatprep.subr.bf16.mxu0 0
    %1180 = vmatpush1.bf16.xpose.msra.mxu0 0
    %1181 = vmatprep.subr.bf16.mxu0 0
    %1182 = vmatpush1.bf16.xpose.msra.mxu0 0
    %1183 = vmatprep.subr.bf16.mxu0 0
    %1184 = vmatpush1.bf16.xpose.msra.mxu0 0
    %1185 = vmatprep.subr.bf16.mxu0 0
    %1186 = vmatpush1.bf16.xpose.msra.mxu0 0
    %1187 = vmatprep.subr.bf16.mxu0 0
    %1188 = vmatpush1.bf16.xpose.msra.mxu0 0
    %1189 = vmatprep.subr.bf16.mxu0 0
    %1190 = vmatpush1.bf16.xpose.msra.mxu0 0
    %1191 = vmatprep.subr.bf16.mxu0 0
    %1192 = vmatpush1.bf16.xpose.msra.mxu0 0
    %1193 = vmatprep.subr.bf16.mxu0 0
    %1194 = vmatpush1.bf16.xpose.msra.mxu0 0
    %1195 = vmatprep.subr.bf16.mxu0 0
    %1196 = vmatpush1.bf16.xpose.msra.mxu0 0
    %1197 = vmatprep.subr.bf16.mxu0 0
    %1198 = vmatpush1.bf16.xpose.msra.mxu0 0
    %1199 = vmatprep.subr.bf16.mxu0 0
    %1200 = vmatpush1.bf16.xpose.msra.mxu0 0
    %1201 = vmatprep.subr.bf16.mxu0 0
    %1202 = vmatpush1.bf16.xpose.msra.mxu0 0
    %1203 = vmatprep.subr.bf16.mxu0 0
    %1204 = vmatpush1.bf16.xpose.msra.mxu0 0
    %1205 = vmatprep.subr.bf16.mxu0 0
    %1206 = vmatpush1.bf16.xpose.msra.mxu0 0
    %1207 = vmatprep.subr.bf16.mxu0 0
    %1208 = vmatpush1.bf16.xpose.msra.mxu0 0
    %1209 = vmatprep.mubr.bf16.mxu0 0
    %1210 = vmatmul.mubr.bf16.gmra.mrb[0].mxu0 %v1172
    %v1211 = vpop.f32.mrb[0].mxu0
    %v1212 = vadd.f32 0.0, %v1211
    %v1213 = vpop.f32.mrb[0].mxu0
    %v1214 = vpop.f32.mrb[0].mxu0
    %v1215 = vadd.f32 0.0, %v1214
    %v1216 = vpop.f32.mrb[0].mxu0
    %1217 = vdwg.mxu0
    %1218 = vrot.lane.b32.xlu0 %v1065, 104
    %v1219 = vpop.permute.xlu0 %1218
    %1220 = vrot.lane.b32.xlu0 %v1065, 72
    %v1221 = vpop.permute.xlu0 %1220
    %v1223 = vsel %vm147, %v1219, 0
    %v1226 = vsel %vm147, %v1221, 0
    %1228 = vmatprep.subr.bf16.mxu0 0
    %1229 = vmatpush1.bf16.xpose.msra.mxu0 %v1226
    %1230 = vmatprep.subr.bf16.mxu0 0
    %1231 = vmatpush1.bf16.xpose.msra.mxu0 0
    %1232 = vmatprep.subr.bf16.mxu0 0
    %1233 = vmatpush1.bf16.xpose.msra.mxu0 0
    %1234 = vmatprep.subr.bf16.mxu0 0
    %1235 = vmatpush1.bf16.xpose.msra.mxu0 0
    %1236 = vmatprep.subr.bf16.mxu0 0
    %1237 = vmatpush1.bf16.xpose.msra.mxu0 0
    %1238 = vmatprep.subr.bf16.mxu0 0
    %1239 = vmatpush1.bf16.xpose.msra.mxu0 0
    %1240 = vmatprep.subr.bf16.mxu0 0
    %1241 = vmatpush1.bf16.xpose.msra.mxu0 0
    %1242 = vmatprep.subr.bf16.mxu0 0
    %1243 = vmatpush1.bf16.xpose.msra.mxu0 0
    %1244 = vmatprep.subr.bf16.mxu0 0
    %1245 = vmatpush1.bf16.xpose.msra.mxu0 0
    %1246 = vmatprep.subr.bf16.mxu0 0
    %1247 = vmatpush1.bf16.xpose.msra.mxu0 0
    %1248 = vmatprep.subr.bf16.mxu0 0
    %1249 = vmatpush1.bf16.xpose.msra.mxu0 0
    %1250 = vmatprep.subr.bf16.mxu0 0
    %1251 = vmatpush1.bf16.xpose.msra.mxu0 0
    %1252 = vmatprep.subr.bf16.mxu0 0
    %1253 = vmatpush1.bf16.xpose.msra.mxu0 0
    %1254 = vmatprep.subr.bf16.mxu0 0
    %1255 = vmatpush1.bf16.xpose.msra.mxu0 0
    %1256 = vmatprep.subr.bf16.mxu0 0
    %1257 = vmatpush1.bf16.xpose.msra.mxu0 0
    %1258 = vmatprep.subr.bf16.mxu0 0
    %1259 = vmatpush1.bf16.xpose.msra.mxu0 0
    %1260 = vmatprep.mubr.bf16.mxu0 0
    %1261 = vmatmul.mubr.bf16.gmra.mrb[0].mxu0 %v1223
    %v1262 = vpop.f32.mrb[0].mxu0
    %v1263 = vadd.f32 0.0, %v1262
    %v1264 = vpop.f32.mrb[0].mxu0
    %v1265 = vpop.f32.mrb[0].mxu0
    %v1266 = vadd.f32 0.0, %v1265
    %v1267 = vpop.f32.mrb[0].mxu0
    %1268 = vdwg.mxu0
    %1271 = vrot.lane.b32.xlu0 %v1161, 16
    %v1272 = vpop.permute.xlu0 %1271
    %1273 = vrot.lane.b32.xlu0 %v1164, 16
    %v1274 = vpop.permute.xlu0 %1273
    %1279 = vrot.lane.b32.xlu0 %v1212, 32
    %v1280 = vpop.permute.xlu0 %1279
    %1281 = vrot.lane.b32.xlu0 %v1215, 32
    %v1282 = vpop.permute.xlu0 %1281
    %1287 = vrot.lane.b32.xlu0 %v1263, 48
    %v1288 = vpop.permute.xlu0 %1287
    %1289 = vrot.lane.b32.xlu0 %v1266, 48
    %v1290 = vpop.permute.xlu0 %1289
    %v1293 = vsel %vm372, %v1110, %v1272
    %v1294 = vsel %vm372, %v1113, %v1274
    %v1295 = vsel %vm37, %v1293, %v1280
    %v1296 = vsel %vm37, %v1294, %v1282
    %v1297 = vsel %vm377, %v1295, %v1288
    %v1298 = vsel %vm377, %v1296, %v1290
    %v1299 = vadd.f32 %v1297, %v31
    %v1300 = vadd.f32 %v1298, %v32
    %v1301 = vsel %vm382, %v1299, -inf
    %1302 = vmax.xlane.f32.xlu0 %v1301
    %v1303 = vpop.xlane.xlu0 %1302
    %v1304 = vsel %vm382, %v1300, -inf
    %1305 = vmax.xlane.f32.xlu0 %v1304
    %v1306 = vpop.xlane.xlu0 %1305
    %v1307 = vsub.f32 %v1299, %v1303
    %v1308 = vsub.f32 %v1300, %v1306
    %v1309 = vmul.f32 %v1307, 1.442695
    %v1310 = vpow.pop %v1309
    %v1311 = vmul.f32 %v1308, 1.442695
    %v1312 = vpow.pop %v1311
    %v1313 = vpack.c.bf16 %v1312, %v1310
    %v1314 = vsel %vm372, %v1310, 0.0
    %1315 = vadd.xlane.f32.xlu0 %v1314
    %v1316 = vpop.xlane.xlu0 %1315
    %v1317 = vsel %vm372, %v1312, 0.0
    %1318 = vadd.xlane.f32.xlu0 %v1317
    %v1319 = vpop.xlane.xlu0 %1318
    %v1320 = vrcp.pop %v1316
    %v1321 = vrcp.pop %v1319
    %1322 = vrot.lane.b32.xlu0 %v1065, 64
    %v1323 = vpop.permute.xlu0 %1322
    %v1326 = vsel %vm372, %v1313, 0
    %1328 = vmatprep.subr.bf16.mxu0 0
    %1329 = vmatpush1.bf16.msra.mxu0 %v1323
    %1330 = vmatprep.subr.bf16.mxu0 0
    %1331 = vmatpush1.bf16.msra.mxu0 0
    %1332 = vmatprep.subr.bf16.mxu0 0
    %1333 = vmatpush1.bf16.msra.mxu0 0
    %1334 = vmatprep.subr.bf16.mxu0 0
    %1335 = vmatpush1.bf16.msra.mxu0 0
    %1336 = vmatprep.subr.bf16.mxu0 0
    %1337 = vmatpush1.bf16.msra.mxu0 0
    %1338 = vmatprep.subr.bf16.mxu0 0
    %1339 = vmatpush1.bf16.msra.mxu0 0
    %1340 = vmatprep.subr.bf16.mxu0 0
    %1341 = vmatpush1.bf16.msra.mxu0 0
    %1342 = vmatprep.subr.bf16.mxu0 0
    %1343 = vmatpush1.bf16.msra.mxu0 0
    %1344 = vmatprep.subr.bf16.mxu0 0
    %1345 = vmatpush1.bf16.msra.mxu0 0
    %1346 = vmatprep.subr.bf16.mxu0 0
    %1347 = vmatpush1.bf16.msra.mxu0 0
    %1348 = vmatprep.subr.bf16.mxu0 0
    %1349 = vmatpush1.bf16.msra.mxu0 0
    %1350 = vmatprep.subr.bf16.mxu0 0
    %1351 = vmatpush1.bf16.msra.mxu0 0
    %1352 = vmatprep.subr.bf16.mxu0 0
    %1353 = vmatpush1.bf16.msra.mxu0 0
    %1354 = vmatprep.subr.bf16.mxu0 0
    %1355 = vmatpush1.bf16.msra.mxu0 0
    %1356 = vmatprep.subr.bf16.mxu0 0
    %1357 = vmatpush1.bf16.msra.mxu0 0
    %1358 = vmatprep.subr.bf16.mxu0 0
    %1359 = vmatpush1.bf16.msra.mxu0 0
    %1360 = vmatprep.mubr.bf16.mxu0 0
    %1361 = vmatmul.mubr.bf16.gmra.mrb[0].mxu0 %v1326
    %v1362 = vpop.f32.mrb[0].mxu0
    %v1363 = vadd.f32 0.0, %v1362
    %v1364 = vpop.f32.mrb[0].mxu0
    %v1365 = vpop.f32.mrb[0].mxu0
    %v1366 = vadd.f32 0.0, %v1365
    %v1367 = vpop.f32.mrb[0].mxu0
    %1368 = vdwg.mxu0
    %v1369 = vmul.f32 %v1363, %v1320
    %v1370 = vmul.f32 %v1366, %v1321
    %1373 = vrot.lane.b32.xlu0 %v1310, 112
    %v1374 = vpop.permute.xlu0 %1373
    %1375 = vrot.lane.b32.xlu0 %v1312, 112
    %v1376 = vpop.permute.xlu0 %1375
    %v1379 = vsel %vm372, %v1374, 0.0
    %1380 = vadd.xlane.f32.xlu0 %v1379
    %v1381 = vpop.xlane.xlu0 %1380
    %v1382 = vsel %vm372, %v1376, 0.0
    %1383 = vadd.xlane.f32.xlu0 %v1382
    %v1384 = vpop.xlane.xlu0 %1383
    %v1385 = vrcp.pop %v1381
    %v1386 = vrcp.pop %v1384
    %1388 = vrot.lane.b32.xlu0 %v1313, 112
    %v1389 = vpop.permute.xlu0 %1388
    %1390 = vrot.lane.b32.xlu0 %v1065, 56
    %v1391 = vpop.permute.xlu0 %1390
    %v1394 = vsel %vm372, %v1389, 0
    %1396 = vmatprep.subr.bf16.mxu0 0
    %1397 = vmatpush1.bf16.msra.mxu0 %v1391
    %1398 = vmatprep.subr.bf16.mxu0 0
    %1399 = vmatpush1.bf16.msra.mxu0 0
    %1400 = vmatprep.subr.bf16.mxu0 0
    %1401 = vmatpush1.bf16.msra.mxu0 0
    %1402 = vmatprep.subr.bf16.mxu0 0
    %1403 = vmatpush1.bf16.msra.mxu0 0
    %1404 = vmatprep.subr.bf16.mxu0 0
    %1405 = vmatpush1.bf16.msra.mxu0 0
    %1406 = vmatprep.subr.bf16.mxu0 0
    %1407 = vmatpush1.bf16.msra.mxu0 0
    %1408 = vmatprep.subr.bf16.mxu0 0
    %1409 = vmatpush1.bf16.msra.mxu0 0
    %1410 = vmatprep.subr.bf16.mxu0 0
    %1411 = vmatpush1.bf16.msra.mxu0 0
    %1412 = vmatprep.subr.bf16.mxu0 0
    %1413 = vmatpush1.bf16.msra.mxu0 0
    %1414 = vmatprep.subr.bf16.mxu0 0
    %1415 = vmatpush1.bf16.msra.mxu0 0
    %1416 = vmatprep.subr.bf16.mxu0 0
    %1417 = vmatpush1.bf16.msra.mxu0 0
    %1418 = vmatprep.subr.bf16.mxu0 0
    %1419 = vmatpush1.bf16.msra.mxu0 0
    %1420 = vmatprep.subr.bf16.mxu0 0
    %1421 = vmatpush1.bf16.msra.mxu0 0
    %1422 = vmatprep.subr.bf16.mxu0 0
    %1423 = vmatpush1.bf16.msra.mxu0 0
    %1424 = vmatprep.subr.bf16.mxu0 0
    %1425 = vmatpush1.bf16.msra.mxu0 0
    %1426 = vmatprep.subr.bf16.mxu0 0
    %1427 = vmatpush1.bf16.msra.mxu0 0
    %1428 = vmatprep.mubr.bf16.mxu0 0
    %1429 = vmatmul.mubr.bf16.gmra.mrb[0].mxu0 %v1394
    %v1430 = vpop.f32.mrb[0].mxu0
    %v1431 = vadd.f32 0.0, %v1430
    %v1432 = vpop.f32.mrb[0].mxu0
    %v1433 = vpop.f32.mrb[0].mxu0
    %v1434 = vadd.f32 0.0, %v1433
    %v1435 = vpop.f32.mrb[0].mxu0
    %1436 = vdwg.mxu0
    %v1437 = vmul.f32 %v1431, %v1385
    %v1438 = vmul.f32 %v1434, %v1386
    %1439 = vrot.lane.b32.xlu0 %v1310, 96
    %v1440 = vpop.permute.xlu0 %1439
    %1441 = vrot.lane.b32.xlu0 %v1312, 96
    %v1442 = vpop.permute.xlu0 %1441
    %v1445 = vsel %vm372, %v1440, 0.0
    %1446 = vadd.xlane.f32.xlu0 %v1445
    %v1447 = vpop.xlane.xlu0 %1446
    %v1448 = vsel %vm372, %v1442, 0.0
    %1449 = vadd.xlane.f32.xlu0 %v1448
    %v1450 = vpop.xlane.xlu0 %1449
    %v1451 = vrcp.pop %v1447
    %v1452 = vrcp.pop %v1450
    %1453 = vrot.lane.b32.xlu0 %v1313, 96
    %v1454 = vpop.permute.xlu0 %1453
    %1455 = vrot.lane.b32.xlu0 %v1065, 48
    %v1456 = vpop.permute.xlu0 %1455
    %v1459 = vsel %vm372, %v1454, 0
    %1461 = vmatprep.subr.bf16.mxu0 0
    %1462 = vmatpush1.bf16.msra.mxu0 %v1456
    %1463 = vmatprep.subr.bf16.mxu0 0
    %1464 = vmatpush1.bf16.msra.mxu0 0
    %1465 = vmatprep.subr.bf16.mxu0 0
    %1466 = vmatpush1.bf16.msra.mxu0 0
    %1467 = vmatprep.subr.bf16.mxu0 0
    %1468 = vmatpush1.bf16.msra.mxu0 0
    %1469 = vmatprep.subr.bf16.mxu0 0
    %1470 = vmatpush1.bf16.msra.mxu0 0
    %1471 = vmatprep.subr.bf16.mxu0 0
    %1472 = vmatpush1.bf16.msra.mxu0 0
    %1473 = vmatprep.subr.bf16.mxu0 0
    %1474 = vmatpush1.bf16.msra.mxu0 0
    %1475 = vmatprep.subr.bf16.mxu0 0
    %1476 = vmatpush1.bf16.msra.mxu0 0
    %1477 = vmatprep.subr.bf16.mxu0 0
    %1478 = vmatpush1.bf16.msra.mxu0 0
    %1479 = vmatprep.subr.bf16.mxu0 0
    %1480 = vmatpush1.bf16.msra.mxu0 0
    %1481 = vmatprep.subr.bf16.mxu0 0
    %1482 = vmatpush1.bf16.msra.mxu0 0
    %1483 = vmatprep.subr.bf16.mxu0 0
    %1484 = vmatpush1.bf16.msra.mxu0 0
    %1485 = vmatprep.subr.bf16.mxu0 0
    %1486 = vmatpush1.bf16.msra.mxu0 0
    %1487 = vmatprep.subr.bf16.mxu0 0
    %1488 = vmatpush1.bf16.msra.mxu0 0
    %1489 = vmatprep.subr.bf16.mxu0 0
    %1490 = vmatpush1.bf16.msra.mxu0 0
    %1491 = vmatprep.subr.bf16.mxu0 0
    %1492 = vmatpush1.bf16.msra.mxu0 0
    %1493 = vmatprep.mubr.bf16.mxu0 0
    %1494 = vmatmul.mubr.bf16.gmra.mrb[0].mxu0 %v1459
    %v1495 = vpop.f32.mrb[0].mxu0
    %v1496 = vadd.f32 0.0, %v1495
    %v1497 = vpop.f32.mrb[0].mxu0
    %v1498 = vpop.f32.mrb[0].mxu0
    %v1499 = vadd.f32 0.0, %v1498
    %v1500 = vpop.f32.mrb[0].mxu0
    %1501 = vdwg.mxu0
    %v1502 = vmul.f32 %v1496, %v1451
    %v1503 = vmul.f32 %v1499, %v1452
    %1504 = vrot.lane.b32.xlu0 %v1310, 80
    %v1505 = vpop.permute.xlu0 %1504
    %1506 = vrot.lane.b32.xlu0 %v1312, 80
    %v1507 = vpop.permute.xlu0 %1506
    %v1510 = vsel %vm372, %v1505, 0.0
    %1511 = vadd.xlane.f32.xlu0 %v1510
    %v1512 = vpop.xlane.xlu0 %1511
    %v1513 = vsel %vm372, %v1507, 0.0
    %1514 = vadd.xlane.f32.xlu0 %v1513
    %v1515 = vpop.xlane.xlu0 %1514
    %v1516 = vrcp.pop %v1512
    %v1517 = vrcp.pop %v1515
    %1518 = vrot.lane.b32.xlu0 %v1313, 80
    %v1519 = vpop.permute.xlu0 %1518
    %1520 = vrot.lane.b32.xlu0 %v1065, 40
    %v1521 = vpop.permute.xlu0 %1520
    %v1524 = vsel %vm372, %v1519, 0
    %1526 = vmatprep.subr.bf16.mxu0 0
    %1527 = vmatpush1.bf16.msra.mxu0 %v1521
    %1528 = vmatprep.subr.bf16.mxu0 0
    %1529 = vmatpush1.bf16.msra.mxu0 0
    %1530 = vmatprep.subr.bf16.mxu0 0
    %1531 = vmatpush1.bf16.msra.mxu0 0
    %1532 = vmatprep.subr.bf16.mxu0 0
    %1533 = vmatpush1.bf16.msra.mxu0 0
    %1534 = vmatprep.subr.bf16.mxu0 0
    %1535 = vmatpush1.bf16.msra.mxu0 0
    %1536 = vmatprep.subr.bf16.mxu0 0
    %1537 = vmatpush1.bf16.msra.mxu0 0
    %1538 = vmatprep.subr.bf16.mxu0 0
    %1539 = vmatpush1.bf16.msra.mxu0 0
    %1540 = vmatprep.subr.bf16.mxu0 0
    %1541 = vmatpush1.bf16.msra.mxu0 0
    %1542 = vmatprep.subr.bf16.mxu0 0
    %1543 = vmatpush1.bf16.msra.mxu0 0
    %1544 = vmatprep.subr.bf16.mxu0 0
    %1545 = vmatpush1.bf16.msra.mxu0 0
    %1546 = vmatprep.subr.bf16.mxu0 0
    %1547 = vmatpush1.bf16.msra.mxu0 0
    %1548 = vmatprep.subr.bf16.mxu0 0
    %1549 = vmatpush1.bf16.msra.mxu0 0
    %1550 = vmatprep.subr.bf16.mxu0 0
    %1551 = vmatpush1.bf16.msra.mxu0 0
    %1552 = vmatprep.subr.bf16.mxu0 0
    %1553 = vmatpush1.bf16.msra.mxu0 0
    %1554 = vmatprep.subr.bf16.mxu0 0
    %1555 = vmatpush1.bf16.msra.mxu0 0
    %1556 = vmatprep.subr.bf16.mxu0 0
    %1557 = vmatpush1.bf16.msra.mxu0 0
    %1558 = vmatprep.mubr.bf16.mxu0 0
    %1559 = vmatmul.mubr.bf16.gmra.mrb[0].mxu0 %v1524
    %v1560 = vpop.f32.mrb[0].mxu0
    %v1561 = vadd.f32 0.0, %v1560
    %v1562 = vpop.f32.mrb[0].mxu0
    %v1563 = vpop.f32.mrb[0].mxu0
    %v1564 = vadd.f32 0.0, %v1563
    %v1565 = vpop.f32.mrb[0].mxu0
    %1566 = vdwg.mxu0
    %v1567 = vmul.f32 %v1561, %v1516
    %v1568 = vmul.f32 %v1564, %v1517
    %1571 = vrot.lane.b32.xlu0 %v1437, 8
    %v1572 = vpop.permute.xlu0 %1571
    %1573 = vrot.lane.b32.xlu0 %v1438, 8
    %v1574 = vpop.permute.xlu0 %1573
    %1579 = vrot.lane.b32.xlu0 %v1502, 16
    %v1580 = vpop.permute.xlu0 %1579
    %1581 = vrot.lane.b32.xlu0 %v1503, 16
    %v1582 = vpop.permute.xlu0 %1581
    %1587 = vrot.lane.b32.xlu0 %v1567, 24
    %v1588 = vpop.permute.xlu0 %1587
    %1589 = vrot.lane.b32.xlu0 %v1568, 24
    %v1590 = vpop.permute.xlu0 %1589
    %v1593 = vsel %vm147, %v1369, %v1572
    %v1594 = vsel %vm147, %v1370, %v1574
    %v1595 = vsel %vm372, %v1593, %v1580
    %v1596 = vsel %vm372, %v1594, %v1582
    %v1597 = vsel %vm679, %v1595, %v1588
    %v1598 = vsel %vm679, %v1596, %v1590
    %v1599 = vpack.c.bf16 %v1598, %v1597
    %s1600 = scalar_lea.vmem %s4, 16
    %v1601 = vld [vmem:[%s1600] sm:$0xf]
    %v1602 = vld [vmem:[%s1600 + $0x4] sm:$0xf]
    %v1603 = vld [vmem:[%s1600 + $0x8] sm:$0xf]
    %v1604 = vld [vmem:[%s1600 + $0xc] sm:$0xf]
    %v1605 = vld [vmem:[%s2 + $0xc] sm:$0x1]
    %v1606 = vlaneseq
    %v1607 = vshrl.u32 %v1606, 7
    %v1608 = vsub.s32 0, %v1607
    %v1609 = vrot.slane %v1605, %v1608
    %v1614 = vunpack.c.l.b16 %v1601
    %v1615 = vunpack.c.l.b16 %v1602
    %v1616 = vunpack.c.l.b16 %v1603
    %v1617 = vunpack.c.l.b16 %v1604
    %v1618 = vpack.c.b16 %v1615, %v1614
    %v1619 = vpack.c.b16 %v1617, %v1616
    %v1623 = vsel %vm37, %v1599, 0
    %1625 = vmatprep.subr.bf16.mxu0 0
    %1626 = vmatpush1.bf16.msra.mxu0 %v1618
    %1627 = vmatprep.subr.bf16.mxu0 0
    %1628 = vmatpush1.bf16.msra.mxu0 %v1619
    %1629 = vmatprep.subr.bf16.mxu0 0
    %1630 = vmatpush1.bf16.msra.mxu0 0
    %1631 = vmatprep.subr.bf16.mxu0 0
    %1632 = vmatpush1.bf16.msra.mxu0 0
    %1633 = vmatprep.subr.bf16.mxu0 0
    %1634 = vmatpush1.bf16.msra.mxu0 0
    %1635 = vmatprep.subr.bf16.mxu0 0
    %1636 = vmatpush1.bf16.msra.mxu0 0
    %1637 = vmatprep.subr.bf16.mxu0 0
    %1638 = vmatpush1.bf16.msra.mxu0 0
    %1639 = vmatprep.subr.bf16.mxu0 0
    %1640 = vmatpush1.bf16.msra.mxu0 0
    %1641 = vmatprep.subr.bf16.mxu0 0
    %1642 = vmatpush1.bf16.msra.mxu0 0
    %1643 = vmatprep.subr.bf16.mxu0 0
    %1644 = vmatpush1.bf16.msra.mxu0 0
    %1645 = vmatprep.subr.bf16.mxu0 0
    %1646 = vmatpush1.bf16.msra.mxu0 0
    %1647 = vmatprep.subr.bf16.mxu0 0
    %1648 = vmatpush1.bf16.msra.mxu0 0
    %1649 = vmatprep.subr.bf16.mxu0 0
    %1650 = vmatpush1.bf16.msra.mxu0 0
    %1651 = vmatprep.subr.bf16.mxu0 0
    %1652 = vmatpush1.bf16.msra.mxu0 0
    %1653 = vmatprep.subr.bf16.mxu0 0
    %1654 = vmatpush1.bf16.msra.mxu0 0
    %1655 = vmatprep.subr.bf16.mxu0 0
    %1656 = vmatpush1.bf16.msra.mxu0 0
    %1657 = vmatprep.mubr.bf16.mxu0 0
    %1658 = vmatmul.mubr.bf16.gmra.mrb[0].mxu0 %v1623
    %v1659 = vpop.f32.mrb[0].mxu0
    %v1660 = vadd.f32 %v1609, %v1659
    %v1661 = vpop.f32.mrb[0].mxu0
    %v1662 = vpop.f32.mrb[0].mxu0
    %v1663 = vadd.f32 %v1609, %v1662
    %v1664 = vpop.f32.mrb[0].mxu0
    %1665 = vdwg.mxu0
    %v1666 = vadd.f32 %v1660, %v996
    %v1667 = vadd.f32 %v1663, %v997
    %v1668 = vld [vmem:[%s2 + $0xd] sm:$0x1]
    %v1669 = vld [vmem:[%s2 + $0xe] sm:$0x1]
    %v1670 = vsel %vm37, %v1666, 0.0
    %1671 = vadd.xlane.f32.xlu0 %v1670
    %v1672 = vpop.xlane.xlu0 %1671
    %v1673 = vsel %vm37, %v1667, 0.0
    %1674 = vadd.xlane.f32.xlu0 %v1673
    %v1675 = vpop.xlane.xlu0 %1674
    %v1676 = vmul.f32 %v1672, %v44
    %v1677 = vmul.f32 %v1675, %v44
    %v1678 = vsub.f32 %v1666, %v1676
    %v1679 = vsub.f32 %v1667, %v1677
    %v1680 = vmul.f32 %v1678, %v1678
    %v1681 = vmul.f32 %v1679, %v1679
    %v1682 = vsel %vm37, %v1680, 0.0
    %1683 = vadd.xlane.f32.xlu0 %v1682
    %v1684 = vpop.xlane.xlu0 %1683
    %v1685 = vsel %vm37, %v1681, 0.0
    %1686 = vadd.xlane.f32.xlu0 %v1685
    %v1687 = vpop.xlane.xlu0 %1686
    %v1688 = vmul.f32 %v1684, %v44
    %v1689 = vmul.f32 %v1687, %v44
    %v1690 = vadd.f32 %v1688, 1e-12
    %v1691 = vadd.f32 %v1689, 1e-12
    %v1692 = vrsqrt.pop %v1690
    %v1693 = vrsqrt.pop %v1691
    %v1694 = vmul.f32 %v1678, %v1692
    %v1695 = vmul.f32 %v1679, %v1693
    %v1696 = vlaneseq
    %v1697 = vshrl.u32 %v1696, 7
    %v1698 = vsub.s32 0, %v1697
    %v1699 = vrot.slane %v1668, %v1698
    %v1700 = vmul.f32 %v1694, %v1699
    %v1701 = vmul.f32 %v1695, %v1699
    %v1702 = vlaneseq
    %v1703 = vshrl.u32 %v1702, 7
    %v1704 = vsub.s32 0, %v1703
    %v1705 = vrot.slane %v1669, %v1704
    %v1706 = vadd.f32 %v1700, %v1705
    %v1707 = vadd.f32 %v1701, %v1705
    %v1708 = vpack.c.bf16 %v1707, %v1706
    %s1709 = scalar_lea.vmem %s5, 16
    %v1710 = vld [vmem:[%s1709] sm:$0xf]
    %v1711 = vld [vmem:[%s1709 + $0x4] sm:$0xf]
    %v1712 = vld [vmem:[%s1709 + $0x8] sm:$0xf]
    %v1713 = vld [vmem:[%s1709 + $0xc] sm:$0xf]
    %v1714 = vld [vmem:[%s2 + $0xf] sm:$0x1]
    %v1715 = vlaneseq
    %v1716 = vshrl.u32 %v1715, 7
    %v1717 = vsub.s32 0, %v1716
    %v1718 = vrot.slane %v1714, %v1717
    %v1723 = vunpack.c.l.b16 %v1710
    %v1724 = vunpack.c.l.b16 %v1711
    %v1725 = vunpack.c.l.b16 %v1712
    %v1726 = vunpack.c.l.b16 %v1713
    %v1727 = vpack.c.b16 %v1724, %v1723
    %v1728 = vpack.c.b16 %v1726, %v1725
    %v1732 = vsel %vm37, %v1708, 0
    %1734 = vmatprep.subr.bf16.mxu0 0
    %1735 = vmatpush1.bf16.msra.mxu0 %v1727
    %1736 = vmatprep.subr.bf16.mxu0 0
    %1737 = vmatpush1.bf16.msra.mxu0 %v1728
    %1738 = vmatprep.subr.bf16.mxu0 0
    %1739 = vmatpush1.bf16.msra.mxu0 0
    %1740 = vmatprep.subr.bf16.mxu0 0
    %1741 = vmatpush1.bf16.msra.mxu0 0
    %1742 = vmatprep.subr.bf16.mxu0 0
    %1743 = vmatpush1.bf16.msra.mxu0 0
    %1744 = vmatprep.subr.bf16.mxu0 0
    %1745 = vmatpush1.bf16.msra.mxu0 0
    %1746 = vmatprep.subr.bf16.mxu0 0
    %1747 = vmatpush1.bf16.msra.mxu0 0
    %1748 = vmatprep.subr.bf16.mxu0 0
    %1749 = vmatpush1.bf16.msra.mxu0 0
    %1750 = vmatprep.subr.bf16.mxu0 0
    %1751 = vmatpush1.bf16.msra.mxu0 0
    %1752 = vmatprep.subr.bf16.mxu0 0
    %1753 = vmatpush1.bf16.msra.mxu0 0
    %1754 = vmatprep.subr.bf16.mxu0 0
    %1755 = vmatpush1.bf16.msra.mxu0 0
    %1756 = vmatprep.subr.bf16.mxu0 0
    %1757 = vmatpush1.bf16.msra.mxu0 0
    %1758 = vmatprep.subr.bf16.mxu0 0
    %1759 = vmatpush1.bf16.msra.mxu0 0
    %1760 = vmatprep.subr.bf16.mxu0 0
    %1761 = vmatpush1.bf16.msra.mxu0 0
    %1762 = vmatprep.subr.bf16.mxu0 0
    %1763 = vmatpush1.bf16.msra.mxu0 0
    %1764 = vmatprep.subr.bf16.mxu0 0
    %1765 = vmatpush1.bf16.msra.mxu0 0
    %1766 = vmatprep.mubr.bf16.mxu0 0
    %1767 = vmatmul.mubr.bf16.gmra.mrb[0].mxu0 %v1732
    %v1768 = vpop.f32.mrb[0].mxu0
    %v1769 = vadd.f32 %v1718, %v1768
    %v1770 = vpop.f32.mrb[0].mxu0
    %v1771 = vpop.f32.mrb[0].mxu0
    %v1772 = vadd.f32 %v1718, %v1771
    %v1773 = vpop.f32.mrb[0].mxu0
    %1774 = vdwg.mxu0
    %v1775 = vmul.f32 %v1769, %v1769
    %v1776 = vmul.f32 %v1772, %v1772
    %v1777 = vmul.f32 %v1769, %v1775
    %v1778 = vmul.f32 %v1772, %v1776
    %v1779 = vmul.f32 %v1777, 0.044715
    %v1780 = vmul.f32 %v1778, 0.044715
    %v1781 = vadd.f32 %v1769, %v1779
    %v1782 = vadd.f32 %v1772, %v1780
    %v1783 = vmul.f32 %v1781, 0.7978846
    %v1784 = vmul.f32 %v1782, 0.7978846
    %v1785 = vtanh.pop %v1783
    %v1786 = vtanh.pop %v1784
    %v1787 = vadd.f32 %v1785, 1.0
    %v1788 = vadd.f32 %v1786, 1.0
    %v1789 = vmul.f32 %v1787, 0.5
    %v1790 = vmul.f32 %v1788, 0.5
    %v1791 = vmul.f32 %v1769, %v1789
    %v1792 = vmul.f32 %v1772, %v1790
    %v1793 = vpack.c.bf16 %v1792, %v1791
    %s1794 = scalar_lea.vmem %s6, 32
    %v1795 = vld [vmem:[%s1794] sm:$0xf]
    %v1796 = vld [vmem:[%s1794 + $0x4] sm:$0xf]
    %v1797 = vld [vmem:[%s1794 + $0x8] sm:$0xf]
    %v1798 = vld [vmem:[%s1794 + $0xc] sm:$0xf]
    %v1799 = vld [vmem:[%s1794 + $0x10] sm:$0xf]
    %v1800 = vld [vmem:[%s1794 + $0x14] sm:$0xf]
    %v1801 = vld [vmem:[%s1794 + $0x18] sm:$0xf]
    %v1802 = vld [vmem:[%s1794 + $0x1c] sm:$0xf]
    %v1803 = vld [vmem:[%s2 + $0x10] sm:$0x1]
    %v1804 = vlaneseq
    %v1805 = vshrl.u32 %v1804, 7
    %v1806 = vsub.s32 0, %v1805
    %v1807 = vrot.slane %v1803, %v1806
    %v1816 = vunpack.c.l.b16 %v1795
    %v1817 = vunpack.c.l.b16 %v1796
    %v1818 = vunpack.c.l.b16 %v1797
    %v1819 = vunpack.c.l.b16 %v1798
    %v1820 = vunpack.c.l.b16 %v1799
    %v1821 = vunpack.c.l.b16 %v1800
    %v1822 = vunpack.c.l.b16 %v1801
    %v1823 = vunpack.c.l.b16 %v1802
    %v1824 = vpack.c.b16 %v1817, %v1816
    %v1825 = vpack.c.b16 %v1819, %v1818
    %v1826 = vpack.c.b16 %v1821, %v1820
    %v1827 = vpack.c.b16 %v1823, %v1822
    %v1833 = vsel %vm382, %v1793, 0
    %1835 = vmatprep.subr.bf16.mxu0 0
    %1836 = vmatpush1.bf16.msra.mxu0 %v1824
    %1837 = vmatprep.subr.bf16.mxu0 0
    %1838 = vmatpush1.bf16.msra.mxu0 %v1825
    %1839 = vmatprep.subr.bf16.mxu0 0
    %1840 = vmatpush1.bf16.msra.mxu0 %v1826
    %1841 = vmatprep.subr.bf16.mxu0 0
    %1842 = vmatpush1.bf16.msra.mxu0 %v1827
    %1843 = vmatprep.subr.bf16.mxu0 0
    %1844 = vmatpush1.bf16.msra.mxu0 0
    %1845 = vmatprep.subr.bf16.mxu0 0
    %1846 = vmatpush1.bf16.msra.mxu0 0
    %1847 = vmatprep.subr.bf16.mxu0 0
    %1848 = vmatpush1.bf16.msra.mxu0 0
    %1849 = vmatprep.subr.bf16.mxu0 0
    %1850 = vmatpush1.bf16.msra.mxu0 0
    %1851 = vmatprep.subr.bf16.mxu0 0
    %1852 = vmatpush1.bf16.msra.mxu0 0
    %1853 = vmatprep.subr.bf16.mxu0 0
    %1854 = vmatpush1.bf16.msra.mxu0 0
    %1855 = vmatprep.subr.bf16.mxu0 0
    %1856 = vmatpush1.bf16.msra.mxu0 0
    %1857 = vmatprep.subr.bf16.mxu0 0
    %1858 = vmatpush1.bf16.msra.mxu0 0
    %1859 = vmatprep.subr.bf16.mxu0 0
    %1860 = vmatpush1.bf16.msra.mxu0 0
    %1861 = vmatprep.subr.bf16.mxu0 0
    %1862 = vmatpush1.bf16.msra.mxu0 0
    %1863 = vmatprep.subr.bf16.mxu0 0
    %1864 = vmatpush1.bf16.msra.mxu0 0
    %1865 = vmatprep.subr.bf16.mxu0 0
    %1866 = vmatpush1.bf16.msra.mxu0 0
    %1867 = vmatprep.mubr.bf16.mxu0 0
    %1868 = vmatmul.mubr.bf16.gmra.mrb[0].mxu0 %v1833
    %v1869 = vpop.f32.mrb[0].mxu0
    %v1870 = vadd.f32 %v1807, %v1869
    %v1871 = vpop.f32.mrb[0].mxu0
    %v1872 = vpop.f32.mrb[0].mxu0
    %v1873 = vadd.f32 %v1807, %v1872
    %v1874 = vpop.f32.mrb[0].mxu0
    %1875 = vdwg.mxu0
    %v1876 = vadd.f32 %v1870, %v1706
    %v1877 = vadd.f32 %v1873, %v1707
    %v1878 = vld [vmem:[%s2 + $0x11] sm:$0x1]
    %v1879 = vld [vmem:[%s2 + $0x12] sm:$0x1]
    %v1880 = vsel %vm37, %v1876, 0.0
    %1881 = vadd.xlane.f32.xlu0 %v1880
    %v1882 = vpop.xlane.xlu0 %1881
    %v1883 = vsel %vm37, %v1877, 0.0
    %1884 = vadd.xlane.f32.xlu0 %v1883
    %v1885 = vpop.xlane.xlu0 %1884
    %v1886 = vmul.f32 %v1882, %v44
    %v1887 = vmul.f32 %v1885, %v44
    %v1888 = vsub.f32 %v1876, %v1886
    %v1889 = vsub.f32 %v1877, %v1887
    %v1890 = vmul.f32 %v1888, %v1888
    %v1891 = vmul.f32 %v1889, %v1889
    %v1892 = vsel %vm37, %v1890, 0.0
    %1893 = vadd.xlane.f32.xlu0 %v1892
    %v1894 = vpop.xlane.xlu0 %1893
    %v1895 = vsel %vm37, %v1891, 0.0
    %1896 = vadd.xlane.f32.xlu0 %v1895
    %v1897 = vpop.xlane.xlu0 %1896
    %v1898 = vmul.f32 %v1894, %v44
    %v1899 = vmul.f32 %v1897, %v44
    %v1900 = vadd.f32 %v1898, 1e-12
    %v1901 = vadd.f32 %v1899, 1e-12
    %v1902 = vrsqrt.pop %v1900
    %v1903 = vrsqrt.pop %v1901
    %v1904 = vmul.f32 %v1888, %v1902
    %v1905 = vmul.f32 %v1889, %v1903
    %v1906 = vlaneseq
    %v1907 = vshrl.u32 %v1906, 7
    %v1908 = vsub.s32 0, %v1907
    %v1909 = vrot.slane %v1878, %v1908
    %v1910 = vmul.f32 %v1904, %v1909
    %v1911 = vmul.f32 %v1905, %v1909
    %v1912 = vlaneseq
    %v1913 = vshrl.u32 %v1912, 7
    %v1914 = vsub.s32 0, %v1913
    %v1915 = vrot.slane %v1879, %v1914
    %v1916 = vadd.f32 %v1910, %v1915
    %v1917 = vadd.f32 %v1911, %v1915
    %v1919 = vrot.slane %v1917, 7
    %vm1921 = vcmask 1040384
    %v1922 = vsel %vm1921, %v1916, %v1919
    %v1923 = vpack.c.bf16 %v1922, %v1922
    %v1924 = vld [vmem:[%s7] sm:$0xf]
    %v1925 = vld [vmem:[%s7 + $0x4] sm:$0xf]
    %v1926 = vld [vmem:[%s7 + $0x8] sm:$0xf]
    %v1927 = vld [vmem:[%s7 + $0xc] sm:$0xf]
    %v1928 = vld [vmem:[%s2 + $0x2] sm:$0x1]
    %v1929 = vlaneseq
    %v1930 = vshrl.u32 %v1929, 7
    %v1931 = vsub.s32 0, %v1930
    %v1932 = vrot.slane %v1928, %v1931
    %v1937 = vunpack.c.l.b16 %v1924
    %v1938 = vunpack.c.l.b16 %v1925
    %v1939 = vunpack.c.l.b16 %v1926
    %v1940 = vunpack.c.l.b16 %v1927
    %v1941 = vpack.c.b16 %v1938, %v1937
    %v1942 = vpack.c.b16 %v1940, %v1939
    %v1946 = vsel %vm37, %v1923, 0
    %1948 = vmatprep.subr.bf16.mxu0 0
    %1949 = vmatpush1.bf16.msra.mxu0 %v1941
    %1950 = vmatprep.subr.bf16.mxu0 0
    %1951 = vmatpush1.bf16.msra.mxu0 %v1942
    %1952 = vmatprep.subr.bf16.mxu0 0
    %1953 = vmatpush1.bf16.msra.mxu0 0
    %1954 = vmatprep.subr.bf16.mxu0 0
    %1955 = vmatpush1.bf16.msra.mxu0 0
    %1956 = vmatprep.subr.bf16.mxu0 0
    %1957 = vmatpush1.bf16.msra.mxu0 0
    %1958 = vmatprep.subr.bf16.mxu0 0
    %1959 = vmatpush1.bf16.msra.mxu0 0
    %1960 = vmatprep.subr.bf16.mxu0 0
    %1961 = vmatpush1.bf16.msra.mxu0 0
    %1962 = vmatprep.subr.bf16.mxu0 0
    %1963 = vmatpush1.bf16.msra.mxu0 0
    %1964 = vmatprep.subr.bf16.mxu0 0
    %1965 = vmatpush1.bf16.msra.mxu0 0
    %1966 = vmatprep.subr.bf16.mxu0 0
    %1967 = vmatpush1.bf16.msra.mxu0 0
    %1968 = vmatprep.subr.bf16.mxu0 0
    %1969 = vmatpush1.bf16.msra.mxu0 0
    %1970 = vmatprep.subr.bf16.mxu0 0
    %1971 = vmatpush1.bf16.msra.mxu0 0
    %1972 = vmatprep.subr.bf16.mxu0 0
    %1973 = vmatpush1.bf16.msra.mxu0 0
    %1974 = vmatprep.subr.bf16.mxu0 0
    %1975 = vmatpush1.bf16.msra.mxu0 0
    %1976 = vmatprep.subr.bf16.mxu0 0
    %1977 = vmatpush1.bf16.msra.mxu0 0
    %1978 = vmatprep.subr.bf16.mxu0 0
    %1979 = vmatpush1.bf16.msra.mxu0 0
    %1980 = vmatprep.mubr.bf16.mxu0 0
    %1981 = vmatmul.mubr.bf16.gmra.mrb[0].mxu0 %v1946
    %v1982 = vpop.f32.mrb[0].mxu0
    %v1983 = vadd.f32 %v1932, %v1982
    %v1984 = vpop.f32.mrb[0].mxu0
    %v1985 = vpop.f32.mrb[0].mxu0
    %v1986 = vpop.f32.mrb[0].mxu0
    %1987 = vdwg.mxu0
    %vm1988 = vcmask 17408
    %1989 = vst.msk [vmem:[#allocation2] sm:$0x3] %vm1988, %v1983
    // Predicated region
    $region34: #{model_forward.1} parent=1 // pred_check
      _
    $region35: #{model_forward.1} parent=1 // pred_check_branch
      %1991 = sbr.rel (0) target = $region37
    $region36: #{model_forward.1} parent=1 // pred_region
      %s1993 = ssub.s32 32, 32
      %1994 = vsyncadd [#allocation3], %s1993
      %s1996 = sshll.u32 [#allocation2], 4
      %s1997 = int_to_ptr.vmem [resolvable:$true] %s1996
      %1999 = dma.vmem_to_hbm [thread:$0]  %s1997, 32, %s8, [#allocation3]
    $region37: #{model_forward.1} parent=1 // pred_fallthru
      _
    // Predicated region
    $region38: #{model_forward.1} parent=1 // pred_check
      _
    $region39: #{model_forward.1} parent=1 // pred_check_branch
      %2001 = sbr.rel (0) target = $region41
    $region40: #{model_forward.1} parent=1 // pred_region
      %2002 = dma.done [#allocation3], 32
    $region41: #{model_forward.1} parent=1 // pred_fallthru
      _
    %2003 = vsyncpa [#allocation3], 1

</llo_original>
